<compile_context>
chip_gen: v7x
topology: tpu7x:2x2x1
jax: 0.10.0
libtpu: 0.0.40
codegen_flags: <defaults>
</compile_context>

<pallas_src>
import functools

import jax
import jax.numpy as jnp
from jax import lax
from jax.experimental import pallas as pl
from jax.experimental.pallas import tpu as pltpu


CHAN_LIST = [64, 128, 256, 128]
CONV_CFG = [  # (kernel, stride, padding) per layer
    (12, 6, 6),
    (8, 4, 4),
    (5, 2, 2),
    (3, 1, 1),
]


def _ceil_to(x, m):
    return -(-x // m) * m


def _conv_out(n, k, s, p):
    return (n + 2 * p - k) // s + 1


def _pool_out(n, scale):
    pad = scale // 2
    return (n + 2 * pad - scale) // scale + 1


# ----------------------------------------------------------------------------
# Pallas kernel 1 (main path): the ENTIRE post-im2col network in one launch.
#   p1_ref : (Mp, k1*k1*Cin) bf16, rows ordered (spatial_pos, batch), zero-pad.
#   w1     : (k1*k1*Cin, 64)  bf16        b1: (1, 64)  f32
#   w2v    : (npos*64, 128)   bf16 (valid taps only)   b2: (1, 128) f32
#   w3c    : (128, 256)       bf16 (centre tap)        b3: (1, 256) f32
#   w4c    : (256, 128)       bf16 (centre tap)        b4: (1, 128) f32
#   o_ref  : (B, 128) f32
# ----------------------------------------------------------------------------
def _fused_net_kernel(p1_ref, w1_ref, b1_ref, w2_ref, b2_ref, w3_ref, b3_ref,
                      w4_ref, b4_ref, o_ref):
    batch = o_ref.shape[0]
    c1 = w1_ref.shape[1]
    npos = w2_ref.shape[0] // c1
    assert p1_ref.shape[0] >= npos * batch

    # Layer 1: every spatial position x batch in a single MXU pass.
    y1 = jnp.maximum(
        jnp.dot(p1_ref[...], w1_ref[...], preferred_element_type=jnp.float32)
        + b1_ref[...], 0.0).astype(jnp.bfloat16)          # (Mp, 64)

    # Layer 2 restricted to the valid (non zero-padded) kernel taps:
    # one small matmul per layer-1 spatial position, accumulated in f32.
    # Rows of y1 are (pos, batch)-ordered, so each slice is contiguous.
    acc2 = jnp.zeros((batch, w2_ref.shape[1]), jnp.float32)
    for pos in range(npos):
        acc2 = acc2 + jnp.dot(
            y1[pos * batch:(pos + 1) * batch, :],
            w2_ref[pos * c1:(pos + 1) * c1, :],
            preferred_element_type=jnp.float32)
    y2 = jnp.maximum(acc2 + b2_ref[...], 0.0).astype(jnp.bfloat16)

    # Layers 3/4: 1x1 spatial -> dense with the centre kernel tap.
    y3 = jnp.maximum(
        jnp.dot(y2, w3_ref[...], preferred_element_type=jnp.float32)
        + b3_ref[...], 0.0).astype(jnp.bfloat16)
    y4 = jnp.maximum(
        jnp.dot(y3, w4_ref[...], preferred_element_type=jnp.float32)
        + b4_ref[...], 0.0)
    o_ref[...] = y4.astype(o_ref.dtype)


def pallas_fcn_fused(p1_bf16, fused, batch):
    """Single-launch forward for layers 1..4 (1x1 tail). Returns (B, C4) f32."""
    c4 = fused["b4"].shape[1]
    return pl.pallas_call(
        _fused_net_kernel,
        out_shape=jax.ShapeDtypeStruct((batch, c4), jnp.float32),
    )(p1_bf16, fused["w1"], fused["b1"], fused["w2v"], fused["b2"],
      fused["w3c"], fused["b3"], fused["w4c"], fused["b4"])


# ----------------------------------------------------------------------------
# Pallas kernel 2 (generic fallback): matmul + bias + ReLU, gridded over (M, N).
# Only used when the spatial dims do not collapse to the fused 1x1 tail.
# ----------------------------------------------------------------------------
def _matmul_bias_relu_kernel(x_ref, w_ref, b_ref, o_ref):
    acc = jnp.dot(x_ref[...], w_ref[...], preferred_element_type=jnp.float32)
    o_ref[...] = jnp.maximum(acc + b_ref[...], 0.0).astype(o_ref.dtype)


def pallas_matmul_bias_relu(x_bf16, w_bf16, b_row_f32, n_valid,
                            out_dtype=jnp.float32):
    """relu(x @ w + b); N already padded to a 128 multiple, M to 16."""
    M, K = x_bf16.shape
    _, Np = w_bf16.shape
    TN = 256 if Np % 256 == 0 else 128
    TM = 256 if (M > 512 and M % 256 == 0) else M
    # TODO(synk): set vmem_limit_bytes + shrink TM before scaling to very large
    # images/batches on v7x (64 MiB physical VMEM).
    out = pl.pallas_call(
        _matmul_bias_relu_kernel,
        out_shape=jax.ShapeDtypeStruct((M, Np), out_dtype),
        grid=(M // TM, Np // TN),
        in_specs=[
            pl.BlockSpec((TM, K), lambda m, n: (m, 0)),
            pl.BlockSpec((K, TN), lambda m, n: (0, n)),
            pl.BlockSpec((1, TN), lambda m, n: (0, n)),
        ],
        out_specs=pl.BlockSpec((TM, TN), lambda m, n: (m, n)),
        compiler_params=pltpu.CompilerParams(
            dimension_semantics=("parallel", "parallel"),
        ),
    )(x_bf16, w_bf16, b_row_f32)
    return out[:, :n_valid]


# ----------------------------------------------------------------------------
# Plain-JAX glue (not the hot path).
# TODO(synk): im2col gather and AvgPool2d remain XLA ops (strided window
# gather / reduce_window have no clean rectangular-BlockSpec Pallas mapping).
# ----------------------------------------------------------------------------
def _extract_patches(x, k, stride, pad):
    """x: (B, H, W, C) -> (B, OH, OW, k, k, C) patches."""
    B, H, W, C = x.shape
    xp = jnp.pad(x, ((0, 0), (pad, pad), (pad, pad), (0, 0))) if pad else x
    Hp, Wp = H + 2 * pad, W + 2 * pad
    OH = (Hp - k) // stride + 1
    OW = (Wp - k) // stride + 1
    ii = jnp.arange(OH)[:, None] * stride + jnp.arange(k)[None, :]   # (OH, k)
    jj = jnp.arange(OW)[:, None] * stride + jnp.arange(k)[None, :]   # (OW, k)
    rows = xp[:, ii]                        # (B, OH, k, Wp, C)
    patches = rows[:, :, :, jj]             # (B, OH, k, OW, k, C)
    return patches.transpose(0, 1, 3, 2, 4, 5), OH, OW


def avg_pool2d_nhwc(x, scale):
    """nn.AvgPool2d(scale, scale, padding=scale//2), count_include_pad=True."""
    pad = scale // 2
    xp = jnp.pad(x, ((0, 0), (pad, pad), (pad, pad), (0, 0)))
    summed = lax.reduce_window(
        xp, 0.0, lax.add, (1, scale, scale, 1), (1, scale, scale, 1), "VALID")
    return summed / float(scale * scale)


def init_fcn_params(key, in_channels):
    """PyTorch-layout parameters: (w[OIHW], b) per layer."""
    params = []
    c_in = in_channels
    for c_out, (k, _, _) in zip(CHAN_LIST, CONV_CFG):
        key, kw, kb = jax.random.split(key, 3)
        fan_in = c_in * k * k
        w = jax.random.normal(kw, (c_out, c_in, k, k), jnp.float32) * jnp.sqrt(
            2.0 / fan_in)
        b = jax.random.normal(kb, (c_out,), jnp.float32) * 0.01
        params.append((w, b))
        c_in = c_out
    return params


def _fused_feasible(h1, w1):
    """Static check that layers 2..4 collapse to the fused 1x1 tail."""
    if h1 < 1 or w1 < 1:
        return False
    k2, s2, p2 = CONV_CFG[1]
    if _conv_out(h1, k2, s2, p2) != 1 or _conv_out(w1, k2, s2, p2) != 1:
        return False
    # The single output window [0, k2) must cover every real row/col.
    if p2 + h1 > k2 or p2 + w1 > k2:
        return False
    # Layers 3/4: a 1x1 input must land exactly on the centre tap (p, p).
    for (k, s, p) in CONV_CFG[2:]:
        if _conv_out(1, k, s, p) != 1 or p >= k:
            return False
    return True


def prepare_params(params, image_hw, scale):
    """One-time (outside jit) weight prep: NHWC-patch-ordered bf16 matrices,
    f32 bias rows, centre-tap slices, and the valid-tap layer-2 matrix used by
    the fully fused kernel."""
    layers = []
    for (w, b), (k, s, p) in zip(params, CONV_CFG):
        cout, cin = w.shape[0], w.shape[1]
        # (ki, kj, c) patch order to match _extract_patches flattening.
        w2d = jnp.transpose(w, (2, 3, 1, 0)).reshape(k * k * cin, cout)
        npad = _ceil_to(cout, 128)
        w2d_pad = w2d if npad == cout else jnp.pad(w2d, ((0, 0), (0, npad - cout)))
        b_row = b.reshape(1, cout).astype(jnp.float32)
        b_pad = b_row if npad == cout else jnp.pad(b_row, ((0, 0), (0, npad - cout)))
        # Rows for kernel tap (p, p): the only taps that matter for 1x1 input.
        c0 = (p * k + p) * cin
        w_center = w2d[c0:c0 + cin, :]
        layers.append(dict(
            w2d=w2d.astype(jnp.bfloat16),
            w2d_pad=w2d_pad.astype(jnp.bfloat16),
            b_row=b_row,
            b_pad=b_pad,
            w_center=w_center.astype(jnp.bfloat16),
        ))

    # Static spatial sizes after pool + layer 1, for the fused tail weights.
    H, W = image_hw
    if scale > 1:
        H, W = _pool_out(H, scale), _pool_out(W, scale)
    k1, s1, p1 = CONV_CFG[0]
    h1, w1 = _conv_out(H, k1, s1, p1), _conv_out(W, k1, s1, p1)

    fused = None
    if _fused_feasible(h1, w1):
        w2, _ = params[1]
        k2, _, p2 = CONV_CFG[1]
        c2out, c1in = w2.shape[0], w2.shape[1]
        # Valid-tap rows only: (ki, kj) in [p2, p2+h1) x [p2, p2+w1).
        w2_4d = jnp.transpose(w2, (2, 3, 1, 0))            # (k2, k2, c1, c2)
        w2v = w2_4d[p2:p2 + h1, p2:p2 + w1].reshape(h1 * w1 * c1in, c2out)
        fused = dict(
            w1=layers[0]["w2d"], b1=layers[0]["b_row"],
            w2v=w2v.astype(jnp.bfloat16), b2=layers[1]["b_row"],
            w3c=layers[2]["w_center"], b3=layers[2]["b_row"],
            w4c=layers[3]["w_center"], b4=layers[3]["b_row"],
        )
    return dict(layers=layers, fused=fused)


def conv2d_relu_nhwc(x, layer, k, s, p, out_dtype=jnp.float32):
    """Fallback per-layer path: im2col + Pallas matmul(+bias+ReLU). NHWC."""
    B, _, _, C = x.shape
    patches6, OH, OW = _extract_patches(x, k, s, p)
    M = B * OH * OW
    pm = patches6.reshape(M, k * k * C).astype(jnp.bfloat16)
    Mp = _ceil_to(max(M, 16), 16)
    if Mp > 512:
        Mp = _ceil_to(Mp, 256)
    if Mp != M:
        pm = jnp.pad(pm, ((0, Mp - M), (0, 0)))
    cout = layer["b_row"].shape[1]
    out = pallas_matmul_bias_relu(pm, layer["w2d_pad"], layer["b_pad"], cout,
                                  out_dtype)
    return out[:M].reshape(B, OH, OW, cout)


def fcn_forward(x, prepped, scale):
    """x: NCHW (PyTorch layout). Returns NCHW, matching the module."""
    x = jnp.transpose(x, (0, 2, 3, 1))            # -> NHWC internally
    if scale > 1:
        x = avg_pool2d_nhwc(x, scale)
    B, H0, W0, _ = x.shape
    k1, s1, p1 = CONV_CFG[0]
    H1, W1 = _conv_out(H0, k1, s1, p1), _conv_out(W0, k1, s1, p1)

    fused = prepped["fused"]
    use_fused = (fused is not None and _fused_feasible(H1, W1)
                 and fused["w2v"].shape[0] == H1 * W1 * CHAN_LIST[0])

    if use_fused:
        # Layer-1 patches with (spatial_pos, batch)-major rows so the in-kernel
        # layer-2 accumulation uses only contiguous static slices.
        patches6, OH, OW = _extract_patches(x, k1, s1, p1)   # (B,OH,OW,k,k,C)
        pm = patches6.transpose(1, 2, 0, 3, 4, 5).reshape(
            OH * OW * B, k1 * k1 * x.shape[3]).astype(jnp.bfloat16)
        M = OH * OW * B
        Mp = _ceil_to(max(M, 16), 16)
        if Mp != M:
            pm = jnp.pad(pm, ((0, Mp - M), (0, 0)))
        out = pallas_fcn_fused(pm, fused, B)                 # (B, C4) f32
        out = out.reshape(B, 1, 1, CHAN_LIST[-1])
    else:
        y = x
        for li, (layer, (k, s, p)) in enumerate(zip(prepped["layers"], CONV_CFG)):
            last = (li == len(CONV_CFG) - 1)
            y = conv2d_relu_nhwc(y, layer, k, s, p,
                                 jnp.float32 if last else jnp.bfloat16)
        out = y.astype(jnp.float32)
    return jnp.transpose(out, (0, 3, 1, 2))       # back to NCHW


# Pure-JAX reference (lax conv) with matching bf16-input / f32-accum precision.
def fcn_forward_ref(x, params, scale):
    if scale > 1:
        pad = scale // 2
        xp = jnp.pad(x, ((0, 0), (0, 0), (pad, pad), (pad, pad)))
        x = lax.reduce_window(
            xp, 0.0, lax.add, (1, 1, scale, scale), (1, 1, scale, scale),
            "VALID") / float(scale * scale)
    for (w, b), (k, s, p) in zip(params, CONV_CFG):
        y = lax.conv_general_dilated(
            x.astype(jnp.bfloat16), w.astype(jnp.bfloat16),
            window_strides=(s, s), padding=[(p, p), (p, p)],
            dimension_numbers=("NCHW", "OIHW", "NCHW"),
            preferred_element_type=jnp.float32)
        x = jnp.maximum(y + b[None, :, None, None], 0.0)
    return x


if __name__ == "__main__":
    key = jax.random.PRNGKey(0)
    k_x, k_p = jax.random.split(key)

    in_channels, scale = 4, 2
    x = jax.random.normal(k_x, (2, in_channels, 32, 32), jnp.float32)
    params = init_fcn_params(k_p, in_channels)
    prepped = prepare_params(params, image_hw=(32, 32), scale=scale)
    assert prepped["fused"] is not None   # the single-launch path is exercised

    fwd = jax.jit(functools.partial(fcn_forward, scale=scale))
    out = fwd(x, prepped)
    jax.block_until_ready(out)

    ref = fcn_forward_ref(x, params, scale)
    assert out.shape == ref.shape == (2, CHAN_LIST[-1], 1, 1), out.shape
    assert jnp.allclose(out, ref, atol=2e-2, rtol=2e-2), float(
        jnp.max(jnp.abs(out - ref)))

    print("KERNEL_OK")
</pallas_src>

<mosaic_0001>
module attributes {stable_mosaic.version = 11 : i64} {
  func.func @_fused_net_kernel(%arg0: memref<32x576xbf16, #tpu.memory_space<vmem>>, %arg1: memref<576x64xbf16, #tpu.memory_space<vmem>>, %arg2: memref<1x64xf32, #tpu.memory_space<vmem>>, %arg3: memref<576x128xbf16, #tpu.memory_space<vmem>>, %arg4: memref<1x128xf32, #tpu.memory_space<vmem>>, %arg5: memref<128x256xbf16, #tpu.memory_space<vmem>>, %arg6: memref<1x256xf32, #tpu.memory_space<vmem>>, %arg7: memref<256x128xbf16, #tpu.memory_space<vmem>>, %arg8: memref<1x128xf32, #tpu.memory_space<vmem>>, %arg9: memref<2x128xf32, #tpu.memory_space<vmem>>) attributes {dimension_semantics = [], scalar_prefetch = 0 : i64, scratch_operands = 0 : i64, tpu.core_type = #tpu.core_type<tc>} {
    %c0 = arith.constant 0 : index
    %c0_0 = arith.constant 0 : index
    %0 = vector.load %arg0[%c0, %c0_0] : memref<32x576xbf16, #tpu.memory_space<vmem>>, vector<32x576xbf16>
    %c0_1 = arith.constant 0 : index
    %c0_2 = arith.constant 0 : index
    %1 = vector.load %arg1[%c0_1, %c0_2] : memref<576x64xbf16, #tpu.memory_space<vmem>>, vector<576x64xbf16>
    %cst = arith.constant dense<0.000000e+00> : vector<32x64xf32>
    %2 = tpu.matmul %0, %1, %cst {dimension_numbers = #tpu.dot_dimension_numbers<[1], [0], [0], [1], [0, 0, 1, 1], [], []>} : vector<32x576xbf16>, vector<576x64xbf16>, vector<32x64xf32> -> vector<32x64xf32>
    %c0_3 = arith.constant 0 : index
    %c0_4 = arith.constant 0 : index
    %3 = vector.load %arg2[%c0_3, %c0_4] : memref<1x64xf32, #tpu.memory_space<vmem>>, vector<1x64xf32>
    %4 = vector.broadcast %3 : vector<1x64xf32> to vector<32x64xf32>
    %5 = arith.addf %2, %4 : vector<32x64xf32>
    %cst_5 = arith.constant 0.000000e+00 : f32
    %6 = vector.broadcast %cst_5 : f32 to vector<32x64xf32>
    %7 = arith.maximumf %5, %6 : vector<32x64xf32>
    %8 = arith.truncf %7 : vector<32x64xf32> to vector<32x64xbf16>
    %cst_6 = arith.constant 0.000000e+00 : f32
    %9 = vector.broadcast %cst_6 : f32 to vector<2x128xf32>
    %10 = vector.extract_strided_slice %8 {offsets = [0, 0], sizes = [2, 64], strides = [1, 1]} : vector<32x64xbf16> to vector<2x64xbf16>
    %c0_7 = arith.constant 0 : index
    %c0_8 = arith.constant 0 : index
    %11 = vector.load %arg3[%c0_7, %c0_8] : memref<576x128xbf16, #tpu.memory_space<vmem>>, vector<64x128xbf16>
    %cst_9 = arith.constant dense<0.000000e+00> : vector<2x128xf32>
    %12 = tpu.matmul %10, %11, %cst_9 {dimension_numbers = #tpu.dot_dimension_numbers<[1], [0], [0], [1], [0, 0, 1, 1], [], []>} : vector<2x64xbf16>, vector<64x128xbf16>, vector<2x128xf32> -> vector<2x128xf32>
    %13 = arith.addf %9, %12 : vector<2x128xf32>
    %14 = vector.extract_strided_slice %8 {offsets = [2, 0], sizes = [2, 64], strides = [1, 1]} : vector<32x64xbf16> to vector<2x64xbf16>
    %c64 = arith.constant 64 : index
    %c0_10 = arith.constant 0 : index
    %15 = vector.load %arg3[%c64, %c0_10] : memref<576x128xbf16, #tpu.memory_space<vmem>>, vector<64x128xbf16>
    %cst_11 = arith.constant dense<0.000000e+00> : vector<2x128xf32>
    %16 = tpu.matmul %14, %15, %cst_11 {dimension_numbers = #tpu.dot_dimension_numbers<[1], [0], [0], [1], [0, 0, 1, 1], [], []>} : vector<2x64xbf16>, vector<64x128xbf16>, vector<2x128xf32> -> vector<2x128xf32>
    %17 = arith.addf %13, %16 : vector<2x128xf32>
    %18 = vector.extract_strided_slice %8 {offsets = [4, 0], sizes = [2, 64], strides = [1, 1]} : vector<32x64xbf16> to vector<2x64xbf16>
    %c128 = arith.constant 128 : index
    %c0_12 = arith.constant 0 : index
    %19 = vector.load %arg3[%c128, %c0_12] : memref<576x128xbf16, #tpu.memory_space<vmem>>, vector<64x128xbf16>
    %cst_13 = arith.constant dense<0.000000e+00> : vector<2x128xf32>
    %20 = tpu.matmul %18, %19, %cst_13 {dimension_numbers = #tpu.dot_dimension_numbers<[1], [0], [0], [1], [0, 0, 1, 1], [], []>} : vector<2x64xbf16>, vector<64x128xbf16>, vector<2x128xf32> -> vector<2x128xf32>
    %21 = arith.addf %17, %20 : vector<2x128xf32>
    %22 = vector.extract_strided_slice %8 {offsets = [6, 0], sizes = [2, 64], strides = [1, 1]} : vector<32x64xbf16> to vector<2x64xbf16>
    %c192 = arith.constant 192 : index
    %c0_14 = arith.constant 0 : index
    %23 = vector.load %arg3[%c192, %c0_14] : memref<576x128xbf16, #tpu.memory_space<vmem>>, vector<64x128xbf16>
    %cst_15 = arith.constant dense<0.000000e+00> : vector<2x128xf32>
    %24 = tpu.matmul %22, %23, %cst_15 {dimension_numbers = #tpu.dot_dimension_numbers<[1], [0], [0], [1], [0, 0, 1, 1], [], []>} : vector<2x64xbf16>, vector<64x128xbf16>, vector<2x128xf32> -> vector<2x128xf32>
    %25 = arith.addf %21, %24 : vector<2x128xf32>
    %26 = vector.extract_strided_slice %8 {offsets = [8, 0], sizes = [2, 64], strides = [1, 1]} : vector<32x64xbf16> to vector<2x64xbf16>
    %c256 = arith.constant 256 : index
    %c0_16 = arith.constant 0 : index
    %27 = vector.load %arg3[%c256, %c0_16] : memref<576x128xbf16, #tpu.memory_space<vmem>>, vector<64x128xbf16>
    %cst_17 = arith.constant dense<0.000000e+00> : vector<2x128xf32>
    %28 = tpu.matmul %26, %27, %cst_17 {dimension_numbers = #tpu.dot_dimension_numbers<[1], [0], [0], [1], [0, 0, 1, 1], [], []>} : vector<2x64xbf16>, vector<64x128xbf16>, vector<2x128xf32> -> vector<2x128xf32>
    %29 = arith.addf %25, %28 : vector<2x128xf32>
    %30 = vector.extract_strided_slice %8 {offsets = [10, 0], sizes = [2, 64], strides = [1, 1]} : vector<32x64xbf16> to vector<2x64xbf16>
    %c320 = arith.constant 320 : index
    %c0_18 = arith.constant 0 : index
    %31 = vector.load %arg3[%c320, %c0_18] : memref<576x128xbf16, #tpu.memory_space<vmem>>, vector<64x128xbf16>
    %cst_19 = arith.constant dense<0.000000e+00> : vector<2x128xf32>
    %32 = tpu.matmul %30, %31, %cst_19 {dimension_numbers = #tpu.dot_dimension_numbers<[1], [0], [0], [1], [0, 0, 1, 1], [], []>} : vector<2x64xbf16>, vector<64x128xbf16>, vector<2x128xf32> -> vector<2x128xf32>
    %33 = arith.addf %29, %32 : vector<2x128xf32>
    %34 = vector.extract_strided_slice %8 {offsets = [12, 0], sizes = [2, 64], strides = [1, 1]} : vector<32x64xbf16> to vector<2x64xbf16>
    %c384 = arith.constant 384 : index
    %c0_20 = arith.constant 0 : index
    %35 = vector.load %arg3[%c384, %c0_20] : memref<576x128xbf16, #tpu.memory_space<vmem>>, vector<64x128xbf16>
    %cst_21 = arith.constant dense<0.000000e+00> : vector<2x128xf32>
    %36 = tpu.matmul %34, %35, %cst_21 {dimension_numbers = #tpu.dot_dimension_numbers<[1], [0], [0], [1], [0, 0, 1, 1], [], []>} : vector<2x64xbf16>, vector<64x128xbf16>, vector<2x128xf32> -> vector<2x128xf32>
    %37 = arith.addf %33, %36 : vector<2x128xf32>
    %38 = vector.extract_strided_slice %8 {offsets = [14, 0], sizes = [2, 64], strides = [1, 1]} : vector<32x64xbf16> to vector<2x64xbf16>
    %c448 = arith.constant 448 : index
    %c0_22 = arith.constant 0 : index
    %39 = vector.load %arg3[%c448, %c0_22] : memref<576x128xbf16, #tpu.memory_space<vmem>>, vector<64x128xbf16>
    %cst_23 = arith.constant dense<0.000000e+00> : vector<2x128xf32>
    %40 = tpu.matmul %38, %39, %cst_23 {dimension_numbers = #tpu.dot_dimension_numbers<[1], [0], [0], [1], [0, 0, 1, 1], [], []>} : vector<2x64xbf16>, vector<64x128xbf16>, vector<2x128xf32> -> vector<2x128xf32>
    %41 = arith.addf %37, %40 : vector<2x128xf32>
    %42 = vector.extract_strided_slice %8 {offsets = [16, 0], sizes = [2, 64], strides = [1, 1]} : vector<32x64xbf16> to vector<2x64xbf16>
    %c512 = arith.constant 512 : index
    %c0_24 = arith.constant 0 : index
    %43 = vector.load %arg3[%c512, %c0_24] : memref<576x128xbf16, #tpu.memory_space<vmem>>, vector<64x128xbf16>
    %cst_25 = arith.constant dense<0.000000e+00> : vector<2x128xf32>
    %44 = tpu.matmul %42, %43, %cst_25 {dimension_numbers = #tpu.dot_dimension_numbers<[1], [0], [0], [1], [0, 0, 1, 1], [], []>} : vector<2x64xbf16>, vector<64x128xbf16>, vector<2x128xf32> -> vector<2x128xf32>
    %45 = arith.addf %41, %44 : vector<2x128xf32>
    %c0_26 = arith.constant 0 : index
    %c0_27 = arith.constant 0 : index
    %46 = vector.load %arg4[%c0_26, %c0_27] : memref<1x128xf32, #tpu.memory_space<vmem>>, vector<1x128xf32>
    %47 = vector.broadcast %46 : vector<1x128xf32> to vector<2x128xf32>
    %48 = arith.addf %45, %47 : vector<2x128xf32>
    %cst_28 = arith.constant 0.000000e+00 : f32
    %49 = vector.broadcast %cst_28 : f32 to vector<2x128xf32>
    %50 = arith.maximumf %48, %49 : vector<2x128xf32>
    %51 = arith.truncf %50 : vector<2x128xf32> to vector<2x128xbf16>
    %c0_29 = arith.constant 0 : index
    %c0_30 = arith.constant 0 : index
    %52 = vector.load %arg5[%c0_29, %c0_30] : memref<128x256xbf16, #tpu.memory_space<vmem>>, vector<128x256xbf16>
    %cst_31 = arith.constant dense<0.000000e+00> : vector<2x256xf32>
    %53 = tpu.matmul %51, %52, %cst_31 {dimension_numbers = #tpu.dot_dimension_numbers<[1], [0], [0], [1], [0, 0, 1, 1], [], []>} : vector<2x128xbf16>, vector<128x256xbf16>, vector<2x256xf32> -> vector<2x256xf32>
    %c0_32 = arith.constant 0 : index
    %c0_33 = arith.constant 0 : index
    %54 = vector.load %arg6[%c0_32, %c0_33] : memref<1x256xf32, #tpu.memory_space<vmem>>, vector<1x256xf32>
    %55 = vector.broadcast %54 : vector<1x256xf32> to vector<2x256xf32>
    %56 = arith.addf %53, %55 : vector<2x256xf32>
    %cst_34 = arith.constant 0.000000e+00 : f32
    %57 = vector.broadcast %cst_34 : f32 to vector<2x256xf32>
    %58 = arith.maximumf %56, %57 : vector<2x256xf32>
    %59 = arith.truncf %58 : vector<2x256xf32> to vector<2x256xbf16>
    %c0_35 = arith.constant 0 : index
    %c0_36 = arith.constant 0 : index
    %60 = vector.load %arg7[%c0_35, %c0_36] : memref<256x128xbf16, #tpu.memory_space<vmem>>, vector<256x128xbf16>
    %cst_37 = arith.constant dense<0.000000e+00> : vector<2x128xf32>
    %61 = tpu.matmul %59, %60, %cst_37 {dimension_numbers = #tpu.dot_dimension_numbers<[1], [0], [0], [1], [0, 0, 1, 1], [], []>} : vector<2x256xbf16>, vector<256x128xbf16>, vector<2x128xf32> -> vector<2x128xf32>
    %c0_38 = arith.constant 0 : index
    %c0_39 = arith.constant 0 : index
    %62 = vector.load %arg8[%c0_38, %c0_39] : memref<1x128xf32, #tpu.memory_space<vmem>>, vector<1x128xf32>
    %63 = vector.broadcast %62 : vector<1x128xf32> to vector<2x128xf32>
    %64 = arith.addf %61, %63 : vector<2x128xf32>
    %cst_40 = arith.constant 0.000000e+00 : f32
    %65 = vector.broadcast %cst_40 : f32 to vector<2x128xf32>
    %66 = arith.maximumf %64, %65 : vector<2x128xf32>
    %c0_41 = arith.constant 0 : index
    %c0_42 = arith.constant 0 : index
    %67 = vector.load %arg9[%c0_41, %c0_42] : memref<2x128xf32, #tpu.memory_space<vmem>>, vector<2x128xf32>
    tpu.vector_store %arg9[%c0_41, %c0_42], %66 {strides = array<i32>} : memref<2x128xf32, #tpu.memory_space<vmem>>, vector<2x128xf32>,
    return
  }
}

</mosaic_0001>

<llo_original>
// kernel: fcn_forward.1
$region0: #{fcn_forward.1}
  #allocation0 [shape = 'u32[]', space=smem, size = 0x4, offset = 0x4, fixed_abs, tag = 'smem constant byte address 0x4 - core index']
  #allocation1 [shape = 'u32[144,128]{1,0:T(1,128)}', space=vmem, size = 0x12000, scoped, tag = 'internal scratch']
  %s0 = inlined_call_operand.vmem [shape: bf16[32,576], index: 0, kind: input, shape index: {}]
  %s1 = inlined_call_operand.vmem [shape: bf16[576,64], index: 1, kind: input, shape index: {}]
  %s2 = inlined_call_operand.vmem [shape: f32[1,64], index: 2, kind: input, shape index: {}]
  %s3 = inlined_call_operand.vmem [shape: bf16[576,128], index: 3, kind: input, shape index: {}]
  %s4 = inlined_call_operand.vmem [shape: f32[1,128], index: 4, kind: input, shape index: {}]
  %s5 = inlined_call_operand.vmem [shape: bf16[128,256], index: 5, kind: input, shape index: {}]
  %s6 = inlined_call_operand.vmem [shape: f32[1,256], index: 6, kind: input, shape index: {}]
  %s7 = inlined_call_operand.vmem [shape: bf16[256,128], index: 7, kind: input, shape index: {}]
  %s8 = inlined_call_operand.vmem [shape: f32[1,128], index: 8, kind: input, shape index: {}]
  %s9 = inlined_call_operand.hbm [shape: f32[2,128], index: 9, kind: output, shape index: {}]
  %s10 = sld [smem:[#allocation0]]
  $region46: #{fcn_forward.1} parent=0
    _
  %s12 = ssub.s32 1, %s10
  %s13 = scalar_select 0, %s12, %s10
  $region1: #{fcn_forward.1} parent=0
    #allocation2 [shape = 'u8[1024]{0}', space=vmem, size = 0x400, scoped, tag = 'output window, operand 0, single buffered']
    #allocation3 [shape = 's32[1]{0}', space=sflag, size = 0x4, scoped, tag = 'scoped memory for fcn_forward.1']
    %14 = vsyncpa [#allocation3], 0
    // Predicated region
    $region2: #{fcn_forward.1} parent=1 // pred_check
      _
    $region3: #{fcn_forward.1} parent=1 // pred_check_branch
      %16 = sbr.rel (0) target = $region5
    $region4: #{fcn_forward.1} parent=1 // pred_region
      _
    $region5: #{fcn_forward.1} parent=1 // pred_fallthru
      _
    // Predicated region
    $region6: #{fcn_forward.1} parent=1 // pred_check
      _
    $region7: #{fcn_forward.1} parent=1 // pred_check_branch
      %18 = sbr.rel (0) target = $region9
    $region8: #{fcn_forward.1} parent=1 // pred_region
      _
    $region9: #{fcn_forward.1} parent=1 // pred_fallthru
      _
    // Predicated region
    $region10: #{fcn_forward.1} parent=1 // pred_check
      _
    $region11: #{fcn_forward.1} parent=1 // pred_check_branch
      %20 = sbr.rel (0) target = $region13
    $region12: #{fcn_forward.1} parent=1 // pred_region
      _
    $region13: #{fcn_forward.1} parent=1 // pred_fallthru
      _
    // Predicated region
    $region14: #{fcn_forward.1} parent=1 // pred_check
      _
    $region15: #{fcn_forward.1} parent=1 // pred_check_branch
      %22 = sbr.rel (0) target = $region17
    $region16: #{fcn_forward.1} parent=1 // pred_region
      _
    $region17: #{fcn_forward.1} parent=1 // pred_fallthru
      _
    // Predicated region
    $region18: #{fcn_forward.1} parent=1 // pred_check
      _
    $region19: #{fcn_forward.1} parent=1 // pred_check_branch
      %24 = sbr.rel (0) target = $region21
    $region20: #{fcn_forward.1} parent=1 // pred_region
      _
    $region21: #{fcn_forward.1} parent=1 // pred_fallthru
      _
    // Predicated region
    $region22: #{fcn_forward.1} parent=1 // pred_check
      _
    $region23: #{fcn_forward.1} parent=1 // pred_check_branch
      %26 = sbr.rel (0) target = $region25
    $region24: #{fcn_forward.1} parent=1 // pred_region
      _
    $region25: #{fcn_forward.1} parent=1 // pred_fallthru
      _
    // Predicated region
    $region26: #{fcn_forward.1} parent=1 // pred_check
      _
    $region27: #{fcn_forward.1} parent=1 // pred_check_branch
      %28 = sbr.rel (0) target = $region29
    $region28: #{fcn_forward.1} parent=1 // pred_region
      _
    $region29: #{fcn_forward.1} parent=1 // pred_fallthru
      _
    // Predicated region
    $region30: #{fcn_forward.1} parent=1 // pred_check
      _
    $region31: #{fcn_forward.1} parent=1 // pred_check_branch
      %30 = sbr.rel (0) target = $region33
    $region32: #{fcn_forward.1} parent=1 // pred_region
      _
    $region33: #{fcn_forward.1} parent=1 // pred_fallthru
      _
    // Predicated region
    $region34: #{fcn_forward.1} parent=1 // pred_check
      _
    $region35: #{fcn_forward.1} parent=1 // pred_check_branch
      %32 = sbr.rel (0) target = $region37
    $region36: #{fcn_forward.1} parent=1 // pred_region
      _
    $region37: #{fcn_forward.1} parent=1 // pred_fallthru
      _
    %v34 = vld [vmem:[%s0] sm:$0xff]
    %v35 = vld [vmem:[%s0 + $0x8] sm:$0xff]
    %v36 = vld [vmem:[%s0 + $0x10] sm:$0xf]
    %v37 = vld [vmem:[%s0 + $0x14] sm:$0xff]
    %v38 = vld [vmem:[%s0 + $0x1c] sm:$0xff]
    %v39 = vld [vmem:[%s0 + $0x24] sm:$0xf]
    %v40 = vld [vmem:[%s0 + $0x28] sm:$0xff]
    %v41 = vld [vmem:[%s0 + $0x30] sm:$0xff]
    %v42 = vld [vmem:[%s0 + $0x38] sm:$0xf]
    %v43 = vld [vmem:[%s0 + $0x3c] sm:$0xff]
    %v44 = vld [vmem:[%s0 + $0x44] sm:$0xff]
    %v45 = vld [vmem:[%s0 + $0x4c] sm:$0xf]
    %v46 = vld [vmem:[%s1] sm:$0xf]
    %v47 = vld [vmem:[%s1 + $0x4] sm:$0xf]
    %v48 = vld [vmem:[%s1 + $0x8] sm:$0xf]
    %v49 = vld [vmem:[%s1 + $0xc] sm:$0xf]
    %v50 = vld [vmem:[%s1 + $0x10] sm:$0xf]
    %v51 = vld [vmem:[%s1 + $0x14] sm:$0xf]
    %v52 = vld [vmem:[%s1 + $0x18] sm:$0xf]
    %v53 = vld [vmem:[%s1 + $0x1c] sm:$0xf]
    %v54 = vld [vmem:[%s1 + $0x20] sm:$0xf]
    %v55 = vld [vmem:[%s1 + $0x24] sm:$0xf]
    %v56 = vld [vmem:[%s1 + $0x28] sm:$0xf]
    %v57 = vld [vmem:[%s1 + $0x2c] sm:$0xf]
    %v58 = vld [vmem:[%s1 + $0x30] sm:$0xf]
    %v59 = vld [vmem:[%s1 + $0x34] sm:$0xf]
    %v60 = vld [vmem:[%s1 + $0x38] sm:$0xf]
    %v61 = vld [vmem:[%s1 + $0x3c] sm:$0xf]
    %v62 = vld [vmem:[%s1 + $0x40] sm:$0xf]
    %v63 = vld [vmem:[%s1 + $0x44] sm:$0xf]
    %v64 = vld [vmem:[%s1 + $0x48] sm:$0xf]
    %v65 = vld [vmem:[%s1 + $0x4c] sm:$0xf]
    %v66 = vld [vmem:[%s1 + $0x50] sm:$0xf]
    %v67 = vld [vmem:[%s1 + $0x54] sm:$0xf]
    %v68 = vld [vmem:[%s1 + $0x58] sm:$0xf]
    %v69 = vld [vmem:[%s1 + $0x5c] sm:$0xf]
    %v70 = vld [vmem:[%s1 + $0x60] sm:$0xf]
    %v71 = vld [vmem:[%s1 + $0x64] sm:$0xf]
    %v72 = vld [vmem:[%s1 + $0x68] sm:$0xf]
    %v73 = vld [vmem:[%s1 + $0x6c] sm:$0xf]
    %v74 = vld [vmem:[%s1 + $0x70] sm:$0xf]
    %v75 = vld [vmem:[%s1 + $0x74] sm:$0xf]
    %v76 = vld [vmem:[%s1 + $0x78] sm:$0xf]
    %v77 = vld [vmem:[%s1 + $0x7c] sm:$0xf]
    %v78 = vld [vmem:[%s1 + $0x80] sm:$0xf]
    %v79 = vld [vmem:[%s1 + $0x84] sm:$0xf]
    %v80 = vld [vmem:[%s1 + $0x88] sm:$0xf]
    %v81 = vld [vmem:[%s1 + $0x8c] sm:$0xf]
    %v82 = vld [vmem:[%s1 + $0x90] sm:$0xf]
    %v83 = vld [vmem:[%s1 + $0x94] sm:$0xf]
    %v84 = vld [vmem:[%s1 + $0x98] sm:$0xf]
    %v85 = vld [vmem:[%s1 + $0x9c] sm:$0xf]
    %v86 = vld [vmem:[%s1 + $0xa0] sm:$0xf]
    %v87 = vld [vmem:[%s1 + $0xa4] sm:$0xf]
    %v88 = vld [vmem:[%s1 + $0xa8] sm:$0xf]
    %v89 = vld [vmem:[%s1 + $0xac] sm:$0xf]
    %v90 = vld [vmem:[%s1 + $0xb0] sm:$0xf]
    %v91 = vld [vmem:[%s1 + $0xb4] sm:$0xf]
    %v92 = vld [vmem:[%s1 + $0xb8] sm:$0xf]
    %v93 = vld [vmem:[%s1 + $0xbc] sm:$0xf]
    %v94 = vld [vmem:[%s1 + $0xc0] sm:$0xf]
    %v95 = vld [vmem:[%s1 + $0xc4] sm:$0xf]
    %v96 = vld [vmem:[%s1 + $0xc8] sm:$0xf]
    %v97 = vld [vmem:[%s1 + $0xcc] sm:$0xf]
    %v98 = vld [vmem:[%s1 + $0xd0] sm:$0xf]
    %v99 = vld [vmem:[%s1 + $0xd4] sm:$0xf]
    %v100 = vld [vmem:[%s1 + $0xd8] sm:$0xf]
    %v101 = vld [vmem:[%s1 + $0xdc] sm:$0xf]
    %v102 = vld [vmem:[%s1 + $0xe0] sm:$0xf]
    %v103 = vld [vmem:[%s1 + $0xe4] sm:$0xf]
    %v104 = vld [vmem:[%s1 + $0xe8] sm:$0xf]
    %v105 = vld [vmem:[%s1 + $0xec] sm:$0xf]
    %v106 = vld [vmem:[%s1 + $0xf0] sm:$0xf]
    %v107 = vld [vmem:[%s1 + $0xf4] sm:$0xf]
    %v108 = vld [vmem:[%s1 + $0xf8] sm:$0xf]
    %v109 = vld [vmem:[%s1 + $0xfc] sm:$0xf]
    %v110 = vld [vmem:[%s1 + $0x100] sm:$0xf]
    %v111 = vld [vmem:[%s1 + $0x104] sm:$0xf]
    %v112 = vld [vmem:[%s1 + $0x108] sm:$0xf]
    %v113 = vld [vmem:[%s1 + $0x10c] sm:$0xf]
    %v114 = vld [vmem:[%s1 + $0x110] sm:$0xf]
    %v115 = vld [vmem:[%s1 + $0x114] sm:$0xf]
    %v116 = vld [vmem:[%s1 + $0x118] sm:$0xf]
    %v117 = vld [vmem:[%s1 + $0x11c] sm:$0xf]
    %v118 = vld [vmem:[%s2] sm:$0x1]
    %v120 = vlaneseq
    %v121 = vshrl.u32 %v120, 7
    %v122 = vsub.s32 0, %v121
    %v123 = vrot.slane %v118, %v122
    %v137 = vunpack.c.l.b16 %v34
    %v138 = vunpack.c.h.b16 %v34
    %v139 = vunpack.c.l.b16 %v35
    %v140 = vunpack.c.h.b16 %v35
    %v141 = vunpack.c.l.b16 %v36
    %v142 = vunpack.c.l.b16 %v37
    %v143 = vunpack.c.h.b16 %v37
    %v144 = vunpack.c.l.b16 %v38
    %v145 = vunpack.c.h.b16 %v38
    %v146 = vunpack.c.l.b16 %v39
    %v147 = vunpack.c.l.b16 %v40
    %v148 = vunpack.c.h.b16 %v40
    %v149 = vunpack.c.l.b16 %v41
    %v150 = vunpack.c.h.b16 %v41
    %v151 = vunpack.c.l.b16 %v42
    %v152 = vunpack.c.l.b16 %v43
    %v153 = vunpack.c.h.b16 %v43
    %v154 = vunpack.c.l.b16 %v44
    %v155 = vunpack.c.h.b16 %v44
    %v156 = vunpack.c.l.b16 %v45
    %v157 = vpack.c.b16 %v142, %v137
    %v158 = vpack.c.b16 %v143, %v138
    %v159 = vpack.c.b16 %v144, %v139
    %v160 = vpack.c.b16 %v145, %v140
    %v161 = vpack.c.b16 %v146, %v141
    %v162 = vpack.c.b16 %v152, %v147
    %v163 = vpack.c.b16 %v153, %v148
    %v164 = vpack.c.b16 %v154, %v149
    %v165 = vpack.c.b16 %v155, %v150
    %v166 = vpack.c.b16 %v156, %v151
    %v247 = vunpack.c.l.b16 %v46
    %v248 = vunpack.c.l.b16 %v47
    %v249 = vunpack.c.l.b16 %v48
    %v250 = vunpack.c.l.b16 %v49
    %v251 = vunpack.c.l.b16 %v50
    %v252 = vunpack.c.l.b16 %v51
    %v253 = vunpack.c.l.b16 %v52
    %v254 = vunpack.c.l.b16 %v53
    %v255 = vunpack.c.l.b16 %v54
    %v256 = vunpack.c.l.b16 %v55
    %v257 = vunpack.c.l.b16 %v56
    %v258 = vunpack.c.l.b16 %v57
    %v259 = vunpack.c.l.b16 %v58
    %v260 = vunpack.c.l.b16 %v59
    %v261 = vunpack.c.l.b16 %v60
    %v262 = vunpack.c.l.b16 %v61
    %v263 = vunpack.c.l.b16 %v62
    %v264 = vunpack.c.l.b16 %v63
    %v265 = vunpack.c.l.b16 %v64
    %v266 = vunpack.c.l.b16 %v65
    %v267 = vunpack.c.l.b16 %v66
    %v268 = vunpack.c.l.b16 %v67
    %v269 = vunpack.c.l.b16 %v68
    %v270 = vunpack.c.l.b16 %v69
    %v271 = vunpack.c.l.b16 %v70
    %v272 = vunpack.c.l.b16 %v71
    %v273 = vunpack.c.l.b16 %v72
    %v274 = vunpack.c.l.b16 %v73
    %v275 = vunpack.c.l.b16 %v74
    %v276 = vunpack.c.l.b16 %v75
    %v277 = vunpack.c.l.b16 %v76
    %v278 = vunpack.c.l.b16 %v77
    %v279 = vunpack.c.l.b16 %v78
    %v280 = vunpack.c.l.b16 %v79
    %v281 = vunpack.c.l.b16 %v80
    %v282 = vunpack.c.l.b16 %v81
    %v283 = vunpack.c.l.b16 %v82
    %v284 = vunpack.c.l.b16 %v83
    %v285 = vunpack.c.l.b16 %v84
    %v286 = vunpack.c.l.b16 %v85
    %v287 = vunpack.c.l.b16 %v86
    %v288 = vunpack.c.l.b16 %v87
    %v289 = vunpack.c.l.b16 %v88
    %v290 = vunpack.c.l.b16 %v89
    %v291 = vunpack.c.l.b16 %v90
    %v292 = vunpack.c.l.b16 %v91
    %v293 = vunpack.c.l.b16 %v92
    %v294 = vunpack.c.l.b16 %v93
    %v295 = vunpack.c.l.b16 %v94
    %v296 = vunpack.c.l.b16 %v95
    %v297 = vunpack.c.l.b16 %v96
    %v298 = vunpack.c.l.b16 %v97
    %v299 = vunpack.c.l.b16 %v98
    %v300 = vunpack.c.l.b16 %v99
    %v301 = vunpack.c.l.b16 %v100
    %v302 = vunpack.c.l.b16 %v101
    %v303 = vunpack.c.l.b16 %v102
    %v304 = vunpack.c.l.b16 %v103
    %v305 = vunpack.c.l.b16 %v104
    %v306 = vunpack.c.l.b16 %v105
    %v307 = vunpack.c.l.b16 %v106
    %v308 = vunpack.c.l.b16 %v107
    %v309 = vunpack.c.l.b16 %v108
    %v310 = vunpack.c.l.b16 %v109
    %v311 = vunpack.c.l.b16 %v110
    %v312 = vunpack.c.l.b16 %v111
    %v313 = vunpack.c.l.b16 %v112
    %v314 = vunpack.c.l.b16 %v113
    %v315 = vunpack.c.l.b16 %v114
    %v316 = vunpack.c.l.b16 %v115
    %v317 = vunpack.c.l.b16 %v116
    %v318 = vunpack.c.l.b16 %v117
    %v319 = vpack.c.b16 %v248, %v247
    %v320 = vpack.c.b16 %v250, %v249
    %v321 = vpack.c.b16 %v252, %v251
    %v322 = vpack.c.b16 %v254, %v253
    %v323 = vpack.c.b16 %v256, %v255
    %v324 = vpack.c.b16 %v258, %v257
    %v325 = vpack.c.b16 %v260, %v259
    %v326 = vpack.c.b16 %v262, %v261
    %v327 = vpack.c.b16 %v264, %v263
    %v328 = vpack.c.b16 %v266, %v265
    %v329 = vpack.c.b16 %v268, %v267
    %v330 = vpack.c.b16 %v270, %v269
    %v331 = vpack.c.b16 %v272, %v271
    %v332 = vpack.c.b16 %v274, %v273
    %v333 = vpack.c.b16 %v276, %v275
    %v334 = vpack.c.b16 %v278, %v277
    %v335 = vpack.c.b16 %v280, %v279
    %v336 = vpack.c.b16 %v282, %v281
    %v337 = vpack.c.b16 %v284, %v283
    %v338 = vpack.c.b16 %v286, %v285
    %v339 = vpack.c.b16 %v288, %v287
    %v340 = vpack.c.b16 %v290, %v289
    %v341 = vpack.c.b16 %v292, %v291
    %v342 = vpack.c.b16 %v294, %v293
    %v343 = vpack.c.b16 %v296, %v295
    %v344 = vpack.c.b16 %v298, %v297
    %v345 = vpack.c.b16 %v300, %v299
    %v346 = vpack.c.b16 %v302, %v301
    %v347 = vpack.c.b16 %v304, %v303
    %v348 = vpack.c.b16 %v306, %v305
    %v349 = vpack.c.b16 %v308, %v307
    %v350 = vpack.c.b16 %v310, %v309
    %v351 = vpack.c.b16 %v312, %v311
    %v352 = vpack.c.b16 %v314, %v313
    %v353 = vpack.c.b16 %v316, %v315
    %v354 = vpack.c.b16 %v318, %v317
    %vm391 = vcmask 523264
    %v393 = vsel %vm391, %v161, 0
    %v396 = vsel %vm391, %v166, 0
    %398 = vmatprep.subr.bf16.mxu0 0
    %399 = vmatpush1.bf16.msra.mxu0 %v319
    %400 = vmatprep.subr.bf16.mxu0 0
    %401 = vmatpush1.bf16.msra.mxu0 %v320
    %402 = vmatprep.subr.bf16.mxu0 0
    %403 = vmatpush1.bf16.msra.mxu0 %v321
    %404 = vmatprep.subr.bf16.mxu0 0
    %405 = vmatpush1.bf16.msra.mxu0 %v322
    %406 = vmatprep.subr.bf16.mxu0 0
    %407 = vmatpush1.bf16.msra.mxu0 %v323
    %408 = vmatprep.subr.bf16.mxu0 0
    %409 = vmatpush1.bf16.msra.mxu0 %v324
    %410 = vmatprep.subr.bf16.mxu0 0
    %411 = vmatpush1.bf16.msra.mxu0 %v325
    %412 = vmatprep.subr.bf16.mxu0 0
    %413 = vmatpush1.bf16.msra.mxu0 %v326
    %414 = vmatprep.subr.bf16.mxu0 0
    %415 = vmatpush1.bf16.msra.mxu0 %v327
    %416 = vmatprep.subr.bf16.mxu0 0
    %417 = vmatpush1.bf16.msra.mxu0 %v328
    %418 = vmatprep.subr.bf16.mxu0 0
    %419 = vmatpush1.bf16.msra.mxu0 %v329
    %420 = vmatprep.subr.bf16.mxu0 0
    %421 = vmatpush1.bf16.msra.mxu0 %v330
    %422 = vmatprep.subr.bf16.mxu0 0
    %423 = vmatpush1.bf16.msra.mxu0 %v331
    %424 = vmatprep.subr.bf16.mxu0 0
    %425 = vmatpush1.bf16.msra.mxu0 %v332
    %426 = vmatprep.subr.bf16.mxu0 0
    %427 = vmatpush1.bf16.msra.mxu0 %v333
    %428 = vmatprep.subr.bf16.mxu0 0
    %429 = vmatpush1.bf16.msra.mxu0 %v334
    %430 = vmatprep.mubr.bf16.mxu0 %v158
    %431 = vmatmul.mubr.bf16.gmra.mrb[0].mxu0 %v157
    %v432 = vpop.f32.mrb[0].mxu0
    %v433 = vadd.f32 %v123, %v432
    %v434 = vpop.f32.mrb[0].mxu0
    %v435 = vpop.f32.mrb[0].mxu0
    %v436 = vadd.f32 %v123, %v435
    %v437 = vpop.f32.mrb[0].mxu0
    %438 = vmatprep.mubr.bf16.mxu0 %v163
    %439 = vmatmul.mubr.bf16.gmra.mrb[0].mxu0 %v162
    %v440 = vpop.f32.mrb[0].mxu0
    %v441 = vadd.f32 %v123, %v440
    %v442 = vpop.f32.mrb[0].mxu0
    %v443 = vpop.f32.mrb[0].mxu0
    %v444 = vadd.f32 %v123, %v443
    %v445 = vpop.f32.mrb[0].mxu0
    %446 = vdwg.mxu0
    %447 = vmatprep.subr.bf16.mxu0 0
    %448 = vmatpush1.bf16.msra.mxu0 %v335
    %449 = vmatprep.subr.bf16.mxu0 0
    %450 = vmatpush1.bf16.msra.mxu0 %v336
    %451 = vmatprep.subr.bf16.mxu0 0
    %452 = vmatpush1.bf16.msra.mxu0 %v337
    %453 = vmatprep.subr.bf16.mxu0 0
    %454 = vmatpush1.bf16.msra.mxu0 %v338
    %455 = vmatprep.subr.bf16.mxu0 0
    %456 = vmatpush1.bf16.msra.mxu0 %v339
    %457 = vmatprep.subr.bf16.mxu0 0
    %458 = vmatpush1.bf16.msra.mxu0 %v340
    %459 = vmatprep.subr.bf16.mxu0 0
    %460 = vmatpush1.bf16.msra.mxu0 %v341
    %461 = vmatprep.subr.bf16.mxu0 0
    %462 = vmatpush1.bf16.msra.mxu0 %v342
    %463 = vmatprep.subr.bf16.mxu0 0
    %464 = vmatpush1.bf16.msra.mxu0 %v343
    %465 = vmatprep.subr.bf16.mxu0 0
    %466 = vmatpush1.bf16.msra.mxu0 %v344
    %467 = vmatprep.subr.bf16.mxu0 0
    %468 = vmatpush1.bf16.msra.mxu0 %v345
    %469 = vmatprep.subr.bf16.mxu0 0
    %470 = vmatpush1.bf16.msra.mxu0 %v346
    %471 = vmatprep.subr.bf16.mxu0 0
    %472 = vmatpush1.bf16.msra.mxu0 %v347
    %473 = vmatprep.subr.bf16.mxu0 0
    %474 = vmatpush1.bf16.msra.mxu0 %v348
    %475 = vmatprep.subr.bf16.mxu0 0
    %476 = vmatpush1.bf16.msra.mxu0 %v349
    %477 = vmatprep.subr.bf16.mxu0 0
    %478 = vmatpush1.bf16.msra.mxu0 %v350
    %479 = vmatprep.mubr.bf16.mxu0 %v160
    %480 = vmatmul.mubr.bf16.gmra.mrb[0].mxu0 %v159
    %v481 = vpop.f32.mrb[0].mxu0
    %v482 = vadd.f32 %v433, %v481
    %v483 = vpop.f32.mrb[0].mxu0
    %v484 = vpop.f32.mrb[0].mxu0
    %v485 = vadd.f32 %v436, %v484
    %v486 = vpop.f32.mrb[0].mxu0
    %487 = vmatprep.mubr.bf16.mxu0 %v165
    %488 = vmatmul.mubr.bf16.gmra.mrb[0].mxu0 %v164
    %v489 = vpop.f32.mrb[0].mxu0
    %v490 = vadd.f32 %v441, %v489
    %v491 = vpop.f32.mrb[0].mxu0
    %v492 = vpop.f32.mrb[0].mxu0
    %v493 = vadd.f32 %v444, %v492
    %v494 = vpop.f32.mrb[0].mxu0
    %495 = vdwg.mxu0
    %496 = vmatprep.subr.bf16.mxu0 0
    %497 = vmatpush1.bf16.msra.mxu0 %v351
    %498 = vmatprep.subr.bf16.mxu0 0
    %499 = vmatpush1.bf16.msra.mxu0 %v352
    %500 = vmatprep.subr.bf16.mxu0 0
    %501 = vmatpush1.bf16.msra.mxu0 %v353
    %502 = vmatprep.subr.bf16.mxu0 0
    %503 = vmatpush1.bf16.msra.mxu0 %v354
    %504 = vmatprep.subr.bf16.mxu0 0
    %505 = vmatpush1.bf16.msra.mxu0 0
    %506 = vmatprep.subr.bf16.mxu0 0
    %507 = vmatpush1.bf16.msra.mxu0 0
    %508 = vmatprep.subr.bf16.mxu0 0
    %509 = vmatpush1.bf16.msra.mxu0 0
    %510 = vmatprep.subr.bf16.mxu0 0
    %511 = vmatpush1.bf16.msra.mxu0 0
    %512 = vmatprep.subr.bf16.mxu0 0
    %513 = vmatpush1.bf16.msra.mxu0 0
    %514 = vmatprep.subr.bf16.mxu0 0
    %515 = vmatpush1.bf16.msra.mxu0 0
    %516 = vmatprep.subr.bf16.mxu0 0
    %517 = vmatpush1.bf16.msra.mxu0 0
    %518 = vmatprep.subr.bf16.mxu0 0
    %519 = vmatpush1.bf16.msra.mxu0 0
    %520 = vmatprep.subr.bf16.mxu0 0
    %521 = vmatpush1.bf16.msra.mxu0 0
    %522 = vmatprep.subr.bf16.mxu0 0
    %523 = vmatpush1.bf16.msra.mxu0 0
    %524 = vmatprep.subr.bf16.mxu0 0
    %525 = vmatpush1.bf16.msra.mxu0 0
    %526 = vmatprep.subr.bf16.mxu0 0
    %527 = vmatpush1.bf16.msra.mxu0 0
    %528 = vmatprep.mubr.bf16.mxu0 0
    %529 = vmatmul.mubr.bf16.gmra.mrb[0].mxu0 %v393
    %v530 = vpop.f32.mrb[0].mxu0
    %v531 = vadd.f32 %v482, %v530
    %v532 = vpop.f32.mrb[0].mxu0
    %v533 = vpop.f32.mrb[0].mxu0
    %v534 = vadd.f32 %v485, %v533
    %v535 = vpop.f32.mrb[0].mxu0
    %536 = vmatprep.mubr.bf16.mxu0 0
    %537 = vmatmul.mubr.bf16.gmra.mrb[0].mxu0 %v396
    %v538 = vpop.f32.mrb[0].mxu0
    %v539 = vadd.f32 %v490, %v538
    %v540 = vpop.f32.mrb[0].mxu0
    %v541 = vpop.f32.mrb[0].mxu0
    %v542 = vadd.f32 %v493, %v541
    %v543 = vpop.f32.mrb[0].mxu0
    %544 = vdwg.mxu0
    %v545 = vmax.f32 %v531, 0.0
    %v546 = vmax.f32 %v534, 0.0
    %v547 = vmax.f32 %v539, 0.0
    %v548 = vmax.f32 %v542, 0.0
    %v549 = vpack.c.bf16 %v546, %v545
    %v550 = vpack.c.bf16 %v548, %v547
    %v551 = vld [vmem:[%s3] sm:$0xf]
    %v552 = vld [vmem:[%s3 + $0x4] sm:$0xf]
    %v553 = vld [vmem:[%s3 + $0x8] sm:$0xf]
    %v554 = vld [vmem:[%s3 + $0xc] sm:$0xf]
    %v555 = vld [vmem:[%s3 + $0x10] sm:$0xf]
    %v556 = vld [vmem:[%s3 + $0x14] sm:$0xf]
    %v557 = vld [vmem:[%s3 + $0x18] sm:$0xf]
    %v558 = vld [vmem:[%s3 + $0x1c] sm:$0xf]
    %v559 = vld [vmem:[%s3 + $0x20] sm:$0xf]
    %v560 = vld [vmem:[%s3 + $0x24] sm:$0xf]
    %v561 = vld [vmem:[%s3 + $0x28] sm:$0xf]
    %v562 = vld [vmem:[%s3 + $0x2c] sm:$0xf]
    %v563 = vld [vmem:[%s3 + $0x30] sm:$0xf]
    %v564 = vld [vmem:[%s3 + $0x34] sm:$0xf]
    %v565 = vld [vmem:[%s3 + $0x38] sm:$0xf]
    %v566 = vld [vmem:[%s3 + $0x3c] sm:$0xf]
    %v568 = vrot.slane %v549, 1
    %v577 = vunpack.c.l.b16 %v559
    %v578 = vunpack.c.l.b16 %v560
    %v579 = vunpack.c.l.b16 %v561
    %v580 = vunpack.c.l.b16 %v562
    %v581 = vunpack.c.l.b16 %v563
    %v582 = vunpack.c.l.b16 %v564
    %v583 = vunpack.c.l.b16 %v565
    %v584 = vunpack.c.l.b16 %v566
    %v585 = vpack.c.b16 %v578, %v577
    %v586 = vpack.c.b16 %v580, %v579
    %v587 = vpack.c.b16 %v582, %v581
    %v588 = vpack.c.b16 %v584, %v583
    %v594 = vsel %vm391, %v568, 0
    %596 = vmatprep.subr.bf16.mxu0 0
    %597 = vmatpush1.bf16.msra.mxu0 %v585
    %598 = vmatprep.subr.bf16.mxu0 0
    %599 = vmatpush1.bf16.msra.mxu0 %v586
    %600 = vmatprep.subr.bf16.mxu0 0
    %601 = vmatpush1.bf16.msra.mxu0 %v587
    %602 = vmatprep.subr.bf16.mxu0 0
    %603 = vmatpush1.bf16.msra.mxu0 %v588
    %604 = vmatprep.subr.bf16.mxu0 0
    %605 = vmatpush1.bf16.msra.mxu0 0
    %606 = vmatprep.subr.bf16.mxu0 0
    %607 = vmatpush1.bf16.msra.mxu0 0
    %608 = vmatprep.subr.bf16.mxu0 0
    %609 = vmatpush1.bf16.msra.mxu0 0
    %610 = vmatprep.subr.bf16.mxu0 0
    %611 = vmatpush1.bf16.msra.mxu0 0
    %612 = vmatprep.subr.bf16.mxu0 0
    %613 = vmatpush1.bf16.msra.mxu0 0
    %614 = vmatprep.subr.bf16.mxu0 0
    %615 = vmatpush1.bf16.msra.mxu0 0
    %616 = vmatprep.subr.bf16.mxu0 0
    %617 = vmatpush1.bf16.msra.mxu0 0
    %618 = vmatprep.subr.bf16.mxu0 0
    %619 = vmatpush1.bf16.msra.mxu0 0
    %620 = vmatprep.subr.bf16.mxu0 0
    %621 = vmatpush1.bf16.msra.mxu0 0
    %622 = vmatprep.subr.bf16.mxu0 0
    %623 = vmatpush1.bf16.msra.mxu0 0
    %624 = vmatprep.subr.bf16.mxu0 0
    %625 = vmatpush1.bf16.msra.mxu0 0
    %626 = vmatprep.subr.bf16.mxu0 0
    %627 = vmatpush1.bf16.msra.mxu0 0
    %628 = vmatprep.mubr.bf16.mxu0 0
    %629 = vmatmul.mubr.bf16.gmra.mrb[0].mxu0 %v594
    %v630 = vpop.f32.mrb[0].mxu0
    %v631 = vadd.f32 0.0, %v630
    %v632 = vpop.f32.mrb[0].mxu0
    %v633 = vpop.f32.mrb[0].mxu0
    %v634 = vpop.f32.mrb[0].mxu0
    %635 = vdwg.mxu0
    %v644 = vunpack.c.l.b16 %v551
    %v645 = vunpack.c.l.b16 %v552
    %v646 = vunpack.c.l.b16 %v553
    %v647 = vunpack.c.l.b16 %v554
    %v648 = vunpack.c.l.b16 %v555
    %v649 = vunpack.c.l.b16 %v556
    %v650 = vunpack.c.l.b16 %v557
    %v651 = vunpack.c.l.b16 %v558
    %v652 = vpack.c.b16 %v645, %v644
    %v653 = vpack.c.b16 %v647, %v646
    %v654 = vpack.c.b16 %v649, %v648
    %v655 = vpack.c.b16 %v651, %v650
    %v661 = vsel %vm391, %v549, 0
    %663 = vmatprep.subr.bf16.mxu0 0
    %664 = vmatpush1.bf16.msra.mxu0 %v652
    %665 = vmatprep.subr.bf16.mxu0 0
    %666 = vmatpush1.bf16.msra.mxu0 %v653
    %667 = vmatprep.subr.bf16.mxu0 0
    %668 = vmatpush1.bf16.msra.mxu0 %v654
    %669 = vmatprep.subr.bf16.mxu0 0
    %670 = vmatpush1.bf16.msra.mxu0 %v655
    %671 = vmatprep.subr.bf16.mxu0 0
    %672 = vmatpush1.bf16.msra.mxu0 0
    %673 = vmatprep.subr.bf16.mxu0 0
    %674 = vmatpush1.bf16.msra.mxu0 0
    %675 = vmatprep.subr.bf16.mxu0 0
    %676 = vmatpush1.bf16.msra.mxu0 0
    %677 = vmatprep.subr.bf16.mxu0 0
    %678 = vmatpush1.bf16.msra.mxu0 0
    %679 = vmatprep.subr.bf16.mxu0 0
    %680 = vmatpush1.bf16.msra.mxu0 0
    %681 = vmatprep.subr.bf16.mxu0 0
    %682 = vmatpush1.bf16.msra.mxu0 0
    %683 = vmatprep.subr.bf16.mxu0 0
    %684 = vmatpush1.bf16.msra.mxu0 0
    %685 = vmatprep.subr.bf16.mxu0 0
    %686 = vmatpush1.bf16.msra.mxu0 0
    %687 = vmatprep.subr.bf16.mxu0 0
    %688 = vmatpush1.bf16.msra.mxu0 0
    %689 = vmatprep.subr.bf16.mxu0 0
    %690 = vmatpush1.bf16.msra.mxu0 0
    %691 = vmatprep.subr.bf16.mxu0 0
    %692 = vmatpush1.bf16.msra.mxu0 0
    %693 = vmatprep.subr.bf16.mxu0 0
    %694 = vmatpush1.bf16.msra.mxu0 0
    %695 = vmatprep.mubr.bf16.mxu0 0
    %696 = vmatmul.mubr.bf16.gmra.mrb[0].mxu0 %v661
    %v697 = vpop.f32.mrb[0].mxu0
    %v698 = vadd.f32 %v631, %v697
    %v699 = vpop.f32.mrb[0].mxu0
    %v700 = vpop.f32.mrb[0].mxu0
    %v701 = vpop.f32.mrb[0].mxu0
    %702 = vdwg.mxu0
    %v703 = vld [vmem:[%s3 + $0x40] sm:$0xf]
    %v704 = vld [vmem:[%s3 + $0x44] sm:$0xf]
    %v705 = vld [vmem:[%s3 + $0x48] sm:$0xf]
    %v706 = vld [vmem:[%s3 + $0x4c] sm:$0xf]
    %v707 = vld [vmem:[%s3 + $0x50] sm:$0xf]
    %v708 = vld [vmem:[%s3 + $0x54] sm:$0xf]
    %v709 = vld [vmem:[%s3 + $0x58] sm:$0xf]
    %v710 = vld [vmem:[%s3 + $0x5c] sm:$0xf]
    %v711 = vrot.slane %v549, 2
    %v720 = vunpack.c.l.b16 %v703
    %v721 = vunpack.c.l.b16 %v704
    %v722 = vunpack.c.l.b16 %v705
    %v723 = vunpack.c.l.b16 %v706
    %v724 = vunpack.c.l.b16 %v707
    %v725 = vunpack.c.l.b16 %v708
    %v726 = vunpack.c.l.b16 %v709
    %v727 = vunpack.c.l.b16 %v710
    %v728 = vpack.c.b16 %v721, %v720
    %v729 = vpack.c.b16 %v723, %v722
    %v730 = vpack.c.b16 %v725, %v724
    %v731 = vpack.c.b16 %v727, %v726
    %v737 = vsel %vm391, %v711, 0
    %739 = vmatprep.subr.bf16.mxu0 0
    %740 = vmatpush1.bf16.msra.mxu0 %v728
    %741 = vmatprep.subr.bf16.mxu0 0
    %742 = vmatpush1.bf16.msra.mxu0 %v729
    %743 = vmatprep.subr.bf16.mxu0 0
    %744 = vmatpush1.bf16.msra.mxu0 %v730
    %745 = vmatprep.subr.bf16.mxu0 0
    %746 = vmatpush1.bf16.msra.mxu0 %v731
    %747 = vmatprep.subr.bf16.mxu0 0
    %748 = vmatpush1.bf16.msra.mxu0 0
    %749 = vmatprep.subr.bf16.mxu0 0
    %750 = vmatpush1.bf16.msra.mxu0 0
    %751 = vmatprep.subr.bf16.mxu0 0
    %752 = vmatpush1.bf16.msra.mxu0 0
    %753 = vmatprep.subr.bf16.mxu0 0
    %754 = vmatpush1.bf16.msra.mxu0 0
    %755 = vmatprep.subr.bf16.mxu0 0
    %756 = vmatpush1.bf16.msra.mxu0 0
    %757 = vmatprep.subr.bf16.mxu0 0
    %758 = vmatpush1.bf16.msra.mxu0 0
    %759 = vmatprep.subr.bf16.mxu0 0
    %760 = vmatpush1.bf16.msra.mxu0 0
    %761 = vmatprep.subr.bf16.mxu0 0
    %762 = vmatpush1.bf16.msra.mxu0 0
    %763 = vmatprep.subr.bf16.mxu0 0
    %764 = vmatpush1.bf16.msra.mxu0 0
    %765 = vmatprep.subr.bf16.mxu0 0
    %766 = vmatpush1.bf16.msra.mxu0 0
    %767 = vmatprep.subr.bf16.mxu0 0
    %768 = vmatpush1.bf16.msra.mxu0 0
    %769 = vmatprep.subr.bf16.mxu0 0
    %770 = vmatpush1.bf16.msra.mxu0 0
    %771 = vmatprep.mubr.bf16.mxu0 0
    %772 = vmatmul.mubr.bf16.gmra.mrb[0].mxu0 %v737
    %v773 = vpop.f32.mrb[0].mxu0
    %v774 = vadd.f32 0.0, %v773
    %v775 = vpop.f32.mrb[0].mxu0
    %v776 = vpop.f32.mrb[0].mxu0
    %v777 = vpop.f32.mrb[0].mxu0
    %778 = vdwg.mxu0
    %v779 = vadd.f32 %v698, %v774
    %v780 = vld [vmem:[%s3 + $0x60] sm:$0xf]
    %v781 = vld [vmem:[%s3 + $0x64] sm:$0xf]
    %v782 = vld [vmem:[%s3 + $0x68] sm:$0xf]
    %v783 = vld [vmem:[%s3 + $0x6c] sm:$0xf]
    %v784 = vld [vmem:[%s3 + $0x70] sm:$0xf]
    %v785 = vld [vmem:[%s3 + $0x74] sm:$0xf]
    %v786 = vld [vmem:[%s3 + $0x78] sm:$0xf]
    %v787 = vld [vmem:[%s3 + $0x7c] sm:$0xf]
    %v788 = vrot.slane %v549, 3
    %v797 = vunpack.c.l.b16 %v780
    %v798 = vunpack.c.l.b16 %v781
    %v799 = vunpack.c.l.b16 %v782
    %v800 = vunpack.c.l.b16 %v783
    %v801 = vunpack.c.l.b16 %v784
    %v802 = vunpack.c.l.b16 %v785
    %v803 = vunpack.c.l.b16 %v786
    %v804 = vunpack.c.l.b16 %v787
    %v805 = vpack.c.b16 %v798, %v797
    %v806 = vpack.c.b16 %v800, %v799
    %v807 = vpack.c.b16 %v802, %v801
    %v808 = vpack.c.b16 %v804, %v803
    %v814 = vsel %vm391, %v788, 0
    %816 = vmatprep.subr.bf16.mxu0 0
    %817 = vmatpush1.bf16.msra.mxu0 %v805
    %818 = vmatprep.subr.bf16.mxu0 0
    %819 = vmatpush1.bf16.msra.mxu0 %v806
    %820 = vmatprep.subr.bf16.mxu0 0
    %821 = vmatpush1.bf16.msra.mxu0 %v807
    %822 = vmatprep.subr.bf16.mxu0 0
    %823 = vmatpush1.bf16.msra.mxu0 %v808
    %824 = vmatprep.subr.bf16.mxu0 0
    %825 = vmatpush1.bf16.msra.mxu0 0
    %826 = vmatprep.subr.bf16.mxu0 0
    %827 = vmatpush1.bf16.msra.mxu0 0
    %828 = vmatprep.subr.bf16.mxu0 0
    %829 = vmatpush1.bf16.msra.mxu0 0
    %830 = vmatprep.subr.bf16.mxu0 0
    %831 = vmatpush1.bf16.msra.mxu0 0
    %832 = vmatprep.subr.bf16.mxu0 0
    %833 = vmatpush1.bf16.msra.mxu0 0
    %834 = vmatprep.subr.bf16.mxu0 0
    %835 = vmatpush1.bf16.msra.mxu0 0
    %836 = vmatprep.subr.bf16.mxu0 0
    %837 = vmatpush1.bf16.msra.mxu0 0
    %838 = vmatprep.subr.bf16.mxu0 0
    %839 = vmatpush1.bf16.msra.mxu0 0
    %840 = vmatprep.subr.bf16.mxu0 0
    %841 = vmatpush1.bf16.msra.mxu0 0
    %842 = vmatprep.subr.bf16.mxu0 0
    %843 = vmatpush1.bf16.msra.mxu0 0
    %844 = vmatprep.subr.bf16.mxu0 0
    %845 = vmatpush1.bf16.msra.mxu0 0
    %846 = vmatprep.subr.bf16.mxu0 0
    %847 = vmatpush1.bf16.msra.mxu0 0
    %848 = vmatprep.mubr.bf16.mxu0 0
    %849 = vmatmul.mubr.bf16.gmra.mrb[0].mxu0 %v814
    %v850 = vpop.f32.mrb[0].mxu0
    %v851 = vadd.f32 0.0, %v850
    %v852 = vpop.f32.mrb[0].mxu0
    %v853 = vpop.f32.mrb[0].mxu0
    %v854 = vpop.f32.mrb[0].mxu0
    %855 = vdwg.mxu0
    %v856 = vadd.f32 %v779, %v851
    %v857 = vld [vmem:[%s3 + $0x80] sm:$0xf]
    %v858 = vld [vmem:[%s3 + $0x84] sm:$0xf]
    %v859 = vld [vmem:[%s3 + $0x88] sm:$0xf]
    %v860 = vld [vmem:[%s3 + $0x8c] sm:$0xf]
    %v861 = vld [vmem:[%s3 + $0x90] sm:$0xf]
    %v862 = vld [vmem:[%s3 + $0x94] sm:$0xf]
    %v863 = vld [vmem:[%s3 + $0x98] sm:$0xf]
    %v864 = vld [vmem:[%s3 + $0x9c] sm:$0xf]
    %v865 = vrot.slane %v549, 4
    %v874 = vunpack.c.l.b16 %v857
    %v875 = vunpack.c.l.b16 %v858
    %v876 = vunpack.c.l.b16 %v859
    %v877 = vunpack.c.l.b16 %v860
    %v878 = vunpack.c.l.b16 %v861
    %v879 = vunpack.c.l.b16 %v862
    %v880 = vunpack.c.l.b16 %v863
    %v881 = vunpack.c.l.b16 %v864
    %v882 = vpack.c.b16 %v875, %v874
    %v883 = vpack.c.b16 %v877, %v876
    %v884 = vpack.c.b16 %v879, %v878
    %v885 = vpack.c.b16 %v881, %v880
    %v891 = vsel %vm391, %v865, 0
    %893 = vmatprep.subr.bf16.mxu0 0
    %894 = vmatpush1.bf16.msra.mxu0 %v882
    %895 = vmatprep.subr.bf16.mxu0 0
    %896 = vmatpush1.bf16.msra.mxu0 %v883
    %897 = vmatprep.subr.bf16.mxu0 0
    %898 = vmatpush1.bf16.msra.mxu0 %v884
    %899 = vmatprep.subr.bf16.mxu0 0
    %900 = vmatpush1.bf16.msra.mxu0 %v885
    %901 = vmatprep.subr.bf16.mxu0 0
    %902 = vmatpush1.bf16.msra.mxu0 0
    %903 = vmatprep.subr.bf16.mxu0 0
    %904 = vmatpush1.bf16.msra.mxu0 0
    %905 = vmatprep.subr.bf16.mxu0 0
    %906 = vmatpush1.bf16.msra.mxu0 0
    %907 = vmatprep.subr.bf16.mxu0 0
    %908 = vmatpush1.bf16.msra.mxu0 0
    %909 = vmatprep.subr.bf16.mxu0 0
    %910 = vmatpush1.bf16.msra.mxu0 0
    %911 = vmatprep.subr.bf16.mxu0 0
    %912 = vmatpush1.bf16.msra.mxu0 0
    %913 = vmatprep.subr.bf16.mxu0 0
    %914 = vmatpush1.bf16.msra.mxu0 0
    %915 = vmatprep.subr.bf16.mxu0 0
    %916 = vmatpush1.bf16.msra.mxu0 0
    %917 = vmatprep.subr.bf16.mxu0 0
    %918 = vmatpush1.bf16.msra.mxu0 0
    %919 = vmatprep.subr.bf16.mxu0 0
    %920 = vmatpush1.bf16.msra.mxu0 0
    %921 = vmatprep.subr.bf16.mxu0 0
    %922 = vmatpush1.bf16.msra.mxu0 0
    %923 = vmatprep.subr.bf16.mxu0 0
    %924 = vmatpush1.bf16.msra.mxu0 0
    %925 = vmatprep.mubr.bf16.mxu0 0
    %926 = vmatmul.mubr.bf16.gmra.mrb[0].mxu0 %v891
    %v927 = vpop.f32.mrb[0].mxu0
    %v928 = vadd.f32 0.0, %v927
    %v929 = vpop.f32.mrb[0].mxu0
    %v930 = vpop.f32.mrb[0].mxu0
    %v931 = vpop.f32.mrb[0].mxu0
    %932 = vdwg.mxu0
    %v933 = vadd.f32 %v856, %v928
    %v934 = vld [vmem:[%s3 + $0xa0] sm:$0xf]
    %v935 = vld [vmem:[%s3 + $0xa4] sm:$0xf]
    %v936 = vld [vmem:[%s3 + $0xa8] sm:$0xf]
    %v937 = vld [vmem:[%s3 + $0xac] sm:$0xf]
    %v938 = vld [vmem:[%s3 + $0xb0] sm:$0xf]
    %v939 = vld [vmem:[%s3 + $0xb4] sm:$0xf]
    %v940 = vld [vmem:[%s3 + $0xb8] sm:$0xf]
    %v941 = vld [vmem:[%s3 + $0xbc] sm:$0xf]
    %v942 = vrot.slane %v549, 5
    %v951 = vunpack.c.l.b16 %v934
    %v952 = vunpack.c.l.b16 %v935
    %v953 = vunpack.c.l.b16 %v936
    %v954 = vunpack.c.l.b16 %v937
    %v955 = vunpack.c.l.b16 %v938
    %v956 = vunpack.c.l.b16 %v939
    %v957 = vunpack.c.l.b16 %v940
    %v958 = vunpack.c.l.b16 %v941
    %v959 = vpack.c.b16 %v952, %v951
    %v960 = vpack.c.b16 %v954, %v953
    %v961 = vpack.c.b16 %v956, %v955
    %v962 = vpack.c.b16 %v958, %v957
    %v968 = vsel %vm391, %v942, 0
    %970 = vmatprep.subr.bf16.mxu0 0
    %971 = vmatpush1.bf16.msra.mxu0 %v959
    %972 = vmatprep.subr.bf16.mxu0 0
    %973 = vmatpush1.bf16.msra.mxu0 %v960
    %974 = vmatprep.subr.bf16.mxu0 0
    %975 = vmatpush1.bf16.msra.mxu0 %v961
    %976 = vmatprep.subr.bf16.mxu0 0
    %977 = vmatpush1.bf16.msra.mxu0 %v962
    %978 = vmatprep.subr.bf16.mxu0 0
    %979 = vmatpush1.bf16.msra.mxu0 0
    %980 = vmatprep.subr.bf16.mxu0 0
    %981 = vmatpush1.bf16.msra.mxu0 0
    %982 = vmatprep.subr.bf16.mxu0 0
    %983 = vmatpush1.bf16.msra.mxu0 0
    %984 = vmatprep.subr.bf16.mxu0 0
    %985 = vmatpush1.bf16.msra.mxu0 0
    %986 = vmatprep.subr.bf16.mxu0 0
    %987 = vmatpush1.bf16.msra.mxu0 0
    %988 = vmatprep.subr.bf16.mxu0 0
    %989 = vmatpush1.bf16.msra.mxu0 0
    %990 = vmatprep.subr.bf16.mxu0 0
    %991 = vmatpush1.bf16.msra.mxu0 0
    %992 = vmatprep.subr.bf16.mxu0 0
    %993 = vmatpush1.bf16.msra.mxu0 0
    %994 = vmatprep.subr.bf16.mxu0 0
    %995 = vmatpush1.bf16.msra.mxu0 0
    %996 = vmatprep.subr.bf16.mxu0 0
    %997 = vmatpush1.bf16.msra.mxu0 0
    %998 = vmatprep.subr.bf16.mxu0 0
    %999 = vmatpush1.bf16.msra.mxu0 0
    %1000 = vmatprep.subr.bf16.mxu0 0
    %1001 = vmatpush1.bf16.msra.mxu0 0
    %1002 = vmatprep.mubr.bf16.mxu0 0
    %1003 = vmatmul.mubr.bf16.gmra.mrb[0].mxu0 %v968
    %v1004 = vpop.f32.mrb[0].mxu0
    %v1005 = vadd.f32 0.0, %v1004
    %v1006 = vpop.f32.mrb[0].mxu0
    %v1007 = vpop.f32.mrb[0].mxu0
    %v1008 = vpop.f32.mrb[0].mxu0
    %1009 = vdwg.mxu0
    %v1010 = vadd.f32 %v933, %v1005
    %v1011 = vld [vmem:[%s3 + $0xc0] sm:$0xf]
    %v1012 = vld [vmem:[%s3 + $0xc4] sm:$0xf]
    %v1013 = vld [vmem:[%s3 + $0xc8] sm:$0xf]
    %v1014 = vld [vmem:[%s3 + $0xcc] sm:$0xf]
    %v1015 = vld [vmem:[%s3 + $0xd0] sm:$0xf]
    %v1016 = vld [vmem:[%s3 + $0xd4] sm:$0xf]
    %v1017 = vld [vmem:[%s3 + $0xd8] sm:$0xf]
    %v1018 = vld [vmem:[%s3 + $0xdc] sm:$0xf]
    %v1019 = vrot.slane %v549, 6
    %v1028 = vunpack.c.l.b16 %v1011
    %v1029 = vunpack.c.l.b16 %v1012
    %v1030 = vunpack.c.l.b16 %v1013
    %v1031 = vunpack.c.l.b16 %v1014
    %v1032 = vunpack.c.l.b16 %v1015
    %v1033 = vunpack.c.l.b16 %v1016
    %v1034 = vunpack.c.l.b16 %v1017
    %v1035 = vunpack.c.l.b16 %v1018
    %v1036 = vpack.c.b16 %v1029, %v1028
    %v1037 = vpack.c.b16 %v1031, %v1030
    %v1038 = vpack.c.b16 %v1033, %v1032
    %v1039 = vpack.c.b16 %v1035, %v1034
    %v1045 = vsel %vm391, %v1019, 0
    %1047 = vmatprep.subr.bf16.mxu0 0
    %1048 = vmatpush1.bf16.msra.mxu0 %v1036
    %1049 = vmatprep.subr.bf16.mxu0 0
    %1050 = vmatpush1.bf16.msra.mxu0 %v1037
    %1051 = vmatprep.subr.bf16.mxu0 0
    %1052 = vmatpush1.bf16.msra.mxu0 %v1038
    %1053 = vmatprep.subr.bf16.mxu0 0
    %1054 = vmatpush1.bf16.msra.mxu0 %v1039
    %1055 = vmatprep.subr.bf16.mxu0 0
    %1056 = vmatpush1.bf16.msra.mxu0 0
    %1057 = vmatprep.subr.bf16.mxu0 0
    %1058 = vmatpush1.bf16.msra.mxu0 0
    %1059 = vmatprep.subr.bf16.mxu0 0
    %1060 = vmatpush1.bf16.msra.mxu0 0
    %1061 = vmatprep.subr.bf16.mxu0 0
    %1062 = vmatpush1.bf16.msra.mxu0 0
    %1063 = vmatprep.subr.bf16.mxu0 0
    %1064 = vmatpush1.bf16.msra.mxu0 0
    %1065 = vmatprep.subr.bf16.mxu0 0
    %1066 = vmatpush1.bf16.msra.mxu0 0
    %1067 = vmatprep.subr.bf16.mxu0 0
    %1068 = vmatpush1.bf16.msra.mxu0 0
    %1069 = vmatprep.subr.bf16.mxu0 0
    %1070 = vmatpush1.bf16.msra.mxu0 0
    %1071 = vmatprep.subr.bf16.mxu0 0
    %1072 = vmatpush1.bf16.msra.mxu0 0
    %1073 = vmatprep.subr.bf16.mxu0 0
    %1074 = vmatpush1.bf16.msra.mxu0 0
    %1075 = vmatprep.subr.bf16.mxu0 0
    %1076 = vmatpush1.bf16.msra.mxu0 0
    %1077 = vmatprep.subr.bf16.mxu0 0
    %1078 = vmatpush1.bf16.msra.mxu0 0
    %1079 = vmatprep.mubr.bf16.mxu0 0
    %1080 = vmatmul.mubr.bf16.gmra.mrb[0].mxu0 %v1045
    %v1081 = vpop.f32.mrb[0].mxu0
    %v1082 = vadd.f32 0.0, %v1081
    %v1083 = vpop.f32.mrb[0].mxu0
    %v1084 = vpop.f32.mrb[0].mxu0
    %v1085 = vpop.f32.mrb[0].mxu0
    %1086 = vdwg.mxu0
    %v1087 = vadd.f32 %v1010, %v1082
    %v1088 = vld [vmem:[%s3 + $0xe0] sm:$0xf]
    %v1089 = vld [vmem:[%s3 + $0xe4] sm:$0xf]
    %v1090 = vld [vmem:[%s3 + $0xe8] sm:$0xf]
    %v1091 = vld [vmem:[%s3 + $0xec] sm:$0xf]
    %v1092 = vld [vmem:[%s3 + $0xf0] sm:$0xf]
    %v1093 = vld [vmem:[%s3 + $0xf4] sm:$0xf]
    %v1094 = vld [vmem:[%s3 + $0xf8] sm:$0xf]
    %v1095 = vld [vmem:[%s3 + $0xfc] sm:$0xf]
    %v1096 = vrot.slane %v549, 7
    %v1105 = vunpack.c.l.b16 %v1088
    %v1106 = vunpack.c.l.b16 %v1089
    %v1107 = vunpack.c.l.b16 %v1090
    %v1108 = vunpack.c.l.b16 %v1091
    %v1109 = vunpack.c.l.b16 %v1092
    %v1110 = vunpack.c.l.b16 %v1093
    %v1111 = vunpack.c.l.b16 %v1094
    %v1112 = vunpack.c.l.b16 %v1095
    %v1113 = vpack.c.b16 %v1106, %v1105
    %v1114 = vpack.c.b16 %v1108, %v1107
    %v1115 = vpack.c.b16 %v1110, %v1109
    %v1116 = vpack.c.b16 %v1112, %v1111
    %v1122 = vsel %vm391, %v1096, 0
    %1124 = vmatprep.subr.bf16.mxu0 0
    %1125 = vmatpush1.bf16.msra.mxu0 %v1113
    %1126 = vmatprep.subr.bf16.mxu0 0
    %1127 = vmatpush1.bf16.msra.mxu0 %v1114
    %1128 = vmatprep.subr.bf16.mxu0 0
    %1129 = vmatpush1.bf16.msra.mxu0 %v1115
    %1130 = vmatprep.subr.bf16.mxu0 0
    %1131 = vmatpush1.bf16.msra.mxu0 %v1116
    %1132 = vmatprep.subr.bf16.mxu0 0
    %1133 = vmatpush1.bf16.msra.mxu0 0
    %1134 = vmatprep.subr.bf16.mxu0 0
    %1135 = vmatpush1.bf16.msra.mxu0 0
    %1136 = vmatprep.subr.bf16.mxu0 0
    %1137 = vmatpush1.bf16.msra.mxu0 0
    %1138 = vmatprep.subr.bf16.mxu0 0
    %1139 = vmatpush1.bf16.msra.mxu0 0
    %1140 = vmatprep.subr.bf16.mxu0 0
    %1141 = vmatpush1.bf16.msra.mxu0 0
    %1142 = vmatprep.subr.bf16.mxu0 0
    %1143 = vmatpush1.bf16.msra.mxu0 0
    %1144 = vmatprep.subr.bf16.mxu0 0
    %1145 = vmatpush1.bf16.msra.mxu0 0
    %1146 = vmatprep.subr.bf16.mxu0 0
    %1147 = vmatpush1.bf16.msra.mxu0 0
    %1148 = vmatprep.subr.bf16.mxu0 0
    %1149 = vmatpush1.bf16.msra.mxu0 0
    %1150 = vmatprep.subr.bf16.mxu0 0
    %1151 = vmatpush1.bf16.msra.mxu0 0
    %1152 = vmatprep.subr.bf16.mxu0 0
    %1153 = vmatpush1.bf16.msra.mxu0 0
    %1154 = vmatprep.subr.bf16.mxu0 0
    %1155 = vmatpush1.bf16.msra.mxu0 0
    %1156 = vmatprep.mubr.bf16.mxu0 0
    %1157 = vmatmul.mubr.bf16.gmra.mrb[0].mxu0 %v1122
    %v1158 = vpop.f32.mrb[0].mxu0
    %v1159 = vadd.f32 0.0, %v1158
    %v1160 = vpop.f32.mrb[0].mxu0
    %v1161 = vpop.f32.mrb[0].mxu0
    %v1162 = vpop.f32.mrb[0].mxu0
    %1163 = vdwg.mxu0
    %v1164 = vadd.f32 %v1087, %v1159
    %v1165 = vld [vmem:[%s3 + $0x100] sm:$0xf]
    %v1166 = vld [vmem:[%s3 + $0x104] sm:$0xf]
    %v1167 = vld [vmem:[%s3 + $0x108] sm:$0xf]
    %v1168 = vld [vmem:[%s3 + $0x10c] sm:$0xf]
    %v1169 = vld [vmem:[%s3 + $0x110] sm:$0xf]
    %v1170 = vld [vmem:[%s3 + $0x114] sm:$0xf]
    %v1171 = vld [vmem:[%s3 + $0x118] sm:$0xf]
    %v1172 = vld [vmem:[%s3 + $0x11c] sm:$0xf]
    %v1181 = vunpack.c.l.b16 %v1165
    %v1182 = vunpack.c.l.b16 %v1166
    %v1183 = vunpack.c.l.b16 %v1167
    %v1184 = vunpack.c.l.b16 %v1168
    %v1185 = vunpack.c.l.b16 %v1169
    %v1186 = vunpack.c.l.b16 %v1170
    %v1187 = vunpack.c.l.b16 %v1171
    %v1188 = vunpack.c.l.b16 %v1172
    %v1189 = vpack.c.b16 %v1182, %v1181
    %v1190 = vpack.c.b16 %v1184, %v1183
    %v1191 = vpack.c.b16 %v1186, %v1185
    %v1192 = vpack.c.b16 %v1188, %v1187
    %v1198 = vsel %vm391, %v550, 0
    %1200 = vmatprep.subr.bf16.mxu0 0
    %1201 = vmatpush1.bf16.msra.mxu0 %v1189
    %1202 = vmatprep.subr.bf16.mxu0 0
    %1203 = vmatpush1.bf16.msra.mxu0 %v1190
    %1204 = vmatprep.subr.bf16.mxu0 0
    %1205 = vmatpush1.bf16.msra.mxu0 %v1191
    %1206 = vmatprep.subr.bf16.mxu0 0
    %1207 = vmatpush1.bf16.msra.mxu0 %v1192
    %1208 = vmatprep.subr.bf16.mxu0 0
    %1209 = vmatpush1.bf16.msra.mxu0 0
    %1210 = vmatprep.subr.bf16.mxu0 0
    %1211 = vmatpush1.bf16.msra.mxu0 0
    %1212 = vmatprep.subr.bf16.mxu0 0
    %1213 = vmatpush1.bf16.msra.mxu0 0
    %1214 = vmatprep.subr.bf16.mxu0 0
    %1215 = vmatpush1.bf16.msra.mxu0 0
    %1216 = vmatprep.subr.bf16.mxu0 0
    %1217 = vmatpush1.bf16.msra.mxu0 0
    %1218 = vmatprep.subr.bf16.mxu0 0
    %1219 = vmatpush1.bf16.msra.mxu0 0
    %1220 = vmatprep.subr.bf16.mxu0 0
    %1221 = vmatpush1.bf16.msra.mxu0 0
    %1222 = vmatprep.subr.bf16.mxu0 0
    %1223 = vmatpush1.bf16.msra.mxu0 0
    %1224 = vmatprep.subr.bf16.mxu0 0
    %1225 = vmatpush1.bf16.msra.mxu0 0
    %1226 = vmatprep.subr.bf16.mxu0 0
    %1227 = vmatpush1.bf16.msra.mxu0 0
    %1228 = vmatprep.subr.bf16.mxu0 0
    %1229 = vmatpush1.bf16.msra.mxu0 0
    %1230 = vmatprep.subr.bf16.mxu0 0
    %1231 = vmatpush1.bf16.msra.mxu0 0
    %1232 = vmatprep.mubr.bf16.mxu0 0
    %1233 = vmatmul.mubr.bf16.gmra.mrb[0].mxu0 %v1198
    %v1234 = vpop.f32.mrb[0].mxu0
    %v1235 = vadd.f32 0.0, %v1234
    %v1236 = vpop.f32.mrb[0].mxu0
    %v1237 = vpop.f32.mrb[0].mxu0
    %v1238 = vpop.f32.mrb[0].mxu0
    %1239 = vdwg.mxu0
    %v1240 = vadd.f32 %v1164, %v1235
    %v1241 = vld [vmem:[%s4] sm:$0x1]
    %v1243 = vlaneseq
    %v1244 = vshrl.u32 %v1243, 7
    %v1245 = vsub.s32 0, %v1244
    %v1246 = vrot.slane %v1241, %v1245
    %v1248 = vadd.f32 %v1240, %v1246
    %v1249 = vmax.f32 %v1248, 0.0
    %v1250 = vpack.c.bf16 %v1249, %v1249
    %v1251 = vld [vmem:[%s5] sm:$0xff]
    %v1252 = vld [vmem:[%s5 + $0x8] sm:$0xff]
    %v1253 = vld [vmem:[%s5 + $0x10] sm:$0xff]
    %v1254 = vld [vmem:[%s5 + $0x18] sm:$0xff]
    %v1255 = vld [vmem:[%s5 + $0x20] sm:$0xff]
    %v1256 = vld [vmem:[%s5 + $0x28] sm:$0xff]
    %v1257 = vld [vmem:[%s5 + $0x30] sm:$0xff]
    %v1258 = vld [vmem:[%s5 + $0x38] sm:$0xff]
    %v1259 = vld [vmem:[%s5 + $0x40] sm:$0xff]
    %v1260 = vld [vmem:[%s5 + $0x48] sm:$0xff]
    %v1261 = vld [vmem:[%s5 + $0x50] sm:$0xff]
    %v1262 = vld [vmem:[%s5 + $0x58] sm:$0xff]
    %v1263 = vld [vmem:[%s5 + $0x60] sm:$0xff]
    %v1264 = vld [vmem:[%s5 + $0x68] sm:$0xff]
    %v1265 = vld [vmem:[%s5 + $0x70] sm:$0xff]
    %v1266 = vld [vmem:[%s5 + $0x78] sm:$0xff]
    %v1267 = vld [vmem:[%s6] sm:$0x3]
    %v1269 = vlaneseq
    %v1270 = vshrl.u32 %v1269, 7
    %v1271 = vsub.s32 0, %v1270
    %v1272 = vrot.slane %v1267, %v1271
    %v1273 = vlaneseq
    %v1274 = vshrl.u32 %v1273, 7
    %v1275 = vsub.s32 1, %v1274
    %v1276 = vrot.slane %v1267, %v1275
    %v1295 = vunpack.c.l.b16 %v1251
    %v1296 = vunpack.c.h.b16 %v1251
    %v1297 = vunpack.c.l.b16 %v1252
    %v1298 = vunpack.c.h.b16 %v1252
    %v1299 = vunpack.c.l.b16 %v1253
    %v1300 = vunpack.c.h.b16 %v1253
    %v1301 = vunpack.c.l.b16 %v1254
    %v1302 = vunpack.c.h.b16 %v1254
    %v1303 = vunpack.c.l.b16 %v1255
    %v1304 = vunpack.c.h.b16 %v1255
    %v1305 = vunpack.c.l.b16 %v1256
    %v1306 = vunpack.c.h.b16 %v1256
    %v1307 = vunpack.c.l.b16 %v1257
    %v1308 = vunpack.c.h.b16 %v1257
    %v1309 = vunpack.c.l.b16 %v1258
    %v1310 = vunpack.c.h.b16 %v1258
    %v1311 = vunpack.c.l.b16 %v1259
    %v1312 = vunpack.c.h.b16 %v1259
    %v1313 = vunpack.c.l.b16 %v1260
    %v1314 = vunpack.c.h.b16 %v1260
    %v1315 = vunpack.c.l.b16 %v1261
    %v1316 = vunpack.c.h.b16 %v1261
    %v1317 = vunpack.c.l.b16 %v1262
    %v1318 = vunpack.c.h.b16 %v1262
    %v1319 = vunpack.c.l.b16 %v1263
    %v1320 = vunpack.c.h.b16 %v1263
    %v1321 = vunpack.c.l.b16 %v1264
    %v1322 = vunpack.c.h.b16 %v1264
    %v1323 = vunpack.c.l.b16 %v1265
    %v1324 = vunpack.c.h.b16 %v1265
    %v1325 = vunpack.c.l.b16 %v1266
    %v1326 = vunpack.c.h.b16 %v1266
    %v1327 = vpack.c.b16 %v1297, %v1295
    %v1328 = vpack.c.b16 %v1298, %v1296
    %v1329 = vpack.c.b16 %v1301, %v1299
    %v1330 = vpack.c.b16 %v1302, %v1300
    %v1331 = vpack.c.b16 %v1305, %v1303
    %v1332 = vpack.c.b16 %v1306, %v1304
    %v1333 = vpack.c.b16 %v1309, %v1307
    %v1334 = vpack.c.b16 %v1310, %v1308
    %v1335 = vpack.c.b16 %v1313, %v1311
    %v1336 = vpack.c.b16 %v1314, %v1312
    %v1337 = vpack.c.b16 %v1317, %v1315
    %v1338 = vpack.c.b16 %v1318, %v1316
    %v1339 = vpack.c.b16 %v1321, %v1319
    %v1340 = vpack.c.b16 %v1322, %v1320
    %v1341 = vpack.c.b16 %v1325, %v1323
    %v1342 = vpack.c.b16 %v1326, %v1324
    %1359 = vmatprep.subr.bf16.mxu0 %v1328
    %1360 = vmatpush1.bf16.msra.mxu0 %v1327
    %1361 = vmatprep.subr.bf16.mxu0 %v1330
    %1362 = vmatpush1.bf16.msra.mxu0 %v1329
    %1363 = vmatprep.subr.bf16.mxu0 %v1332
    %1364 = vmatpush1.bf16.msra.mxu0 %v1331
    %1365 = vmatprep.subr.bf16.mxu0 %v1334
    %1366 = vmatpush1.bf16.msra.mxu0 %v1333
    %1367 = vmatprep.subr.bf16.mxu0 %v1336
    %1368 = vmatpush1.bf16.msra.mxu0 %v1335
    %1369 = vmatprep.subr.bf16.mxu0 %v1338
    %1370 = vmatpush1.bf16.msra.mxu0 %v1337
    %1371 = vmatprep.subr.bf16.mxu0 %v1340
    %1372 = vmatpush1.bf16.msra.mxu0 %v1339
    %1373 = vmatprep.subr.bf16.mxu0 %v1342
    %1374 = vmatpush1.bf16.msra.mxu0 %v1341
    %1375 = vmatprep.subr.bf16.mxu0 0
    %1376 = vmatpush1.bf16.msra.mxu0 0
    %1377 = vmatprep.subr.bf16.mxu0 0
    %1378 = vmatpush1.bf16.msra.mxu0 0
    %1379 = vmatprep.subr.bf16.mxu0 0
    %1380 = vmatpush1.bf16.msra.mxu0 0
    %1381 = vmatprep.subr.bf16.mxu0 0
    %1382 = vmatpush1.bf16.msra.mxu0 0
    %1383 = vmatprep.subr.bf16.mxu0 0
    %1384 = vmatpush1.bf16.msra.mxu0 0
    %1385 = vmatprep.subr.bf16.mxu0 0
    %1386 = vmatpush1.bf16.msra.mxu0 0
    %1387 = vmatprep.subr.bf16.mxu0 0
    %1388 = vmatpush1.bf16.msra.mxu0 0
    %1389 = vmatprep.subr.bf16.mxu0 0
    %1390 = vmatpush1.bf16.msra.mxu0 0
    %1391 = vmatprep.mubr.bf16.mxu0 0
    %1392 = vmatmul.mubr.bf16.gmra.mrb[0].mxu0 %v1250
    %v1393 = vpop.f32.mrb[0].mxu0
    %v1394 = vadd.f32 %v1272, %v1393
    %v1395 = vpop.f32.mrb[0].mxu0
    %v1396 = vadd.f32 %v1276, %v1395
    %v1397 = vpop.f32.mrb[0].mxu0
    %v1398 = vpop.f32.mrb[0].mxu0
    %1399 = vdwg.mxu0
    %v1400 = vmax.f32 %v1394, 0.0
    %v1401 = vmax.f32 %v1396, 0.0
    %v1402 = vpack.c.bf16 %v1400, %v1400
    %v1403 = vpack.c.bf16 %v1401, %v1401
    %v1404 = vld [vmem:[%s7] sm:$0xf]
    %v1405 = vld [vmem:[%s7 + $0x4] sm:$0xf]
    %v1406 = vld [vmem:[%s7 + $0x8] sm:$0xf]
    %v1407 = vld [vmem:[%s7 + $0xc] sm:$0xf]
    %v1408 = vld [vmem:[%s7 + $0x10] sm:$0xf]
    %v1409 = vld [vmem:[%s7 + $0x14] sm:$0xf]
    %v1410 = vld [vmem:[%s7 + $0x18] sm:$0xf]
    %v1411 = vld [vmem:[%s7 + $0x1c] sm:$0xf]
    %v1412 = vld [vmem:[%s7 + $0x20] sm:$0xf]
    %v1413 = vld [vmem:[%s7 + $0x24] sm:$0xf]
    %v1414 = vld [vmem:[%s7 + $0x28] sm:$0xf]
    %v1415 = vld [vmem:[%s7 + $0x2c] sm:$0xf]
    %v1416 = vld [vmem:[%s7 + $0x30] sm:$0xf]
    %v1417 = vld [vmem:[%s7 + $0x34] sm:$0xf]
    %v1418 = vld [vmem:[%s7 + $0x38] sm:$0xf]
    %v1419 = vld [vmem:[%s7 + $0x3c] sm:$0xf]
    %v1420 = vld [vmem:[%s7 + $0x40] sm:$0xf]
    %v1421 = vld [vmem:[%s7 + $0x44] sm:$0xf]
    %v1422 = vld [vmem:[%s7 + $0x48] sm:$0xf]
    %v1423 = vld [vmem:[%s7 + $0x4c] sm:$0xf]
    %v1424 = vld [vmem:[%s7 + $0x50] sm:$0xf]
    %v1425 = vld [vmem:[%s7 + $0x54] sm:$0xf]
    %v1426 = vld [vmem:[%s7 + $0x58] sm:$0xf]
    %v1427 = vld [vmem:[%s7 + $0x5c] sm:$0xf]
    %v1428 = vld [vmem:[%s7 + $0x60] sm:$0xf]
    %v1429 = vld [vmem:[%s7 + $0x64] sm:$0xf]
    %v1430 = vld [vmem:[%s7 + $0x68] sm:$0xf]
    %v1431 = vld [vmem:[%s7 + $0x6c] sm:$0xf]
    %v1432 = vld [vmem:[%s7 + $0x70] sm:$0xf]
    %v1433 = vld [vmem:[%s7 + $0x74] sm:$0xf]
    %v1434 = vld [vmem:[%s7 + $0x78] sm:$0xf]
    %v1435 = vld [vmem:[%s7 + $0x7c] sm:$0xf]
    %v1436 = vld [vmem:[%s8] sm:$0x1]
    %v1438 = vlaneseq
    %v1439 = vshrl.u32 %v1438, 7
    %v1440 = vsub.s32 0, %v1439
    %v1441 = vrot.slane %v1436, %v1440
    %v1475 = vunpack.c.l.b16 %v1404
    %v1476 = vunpack.c.l.b16 %v1405
    %v1477 = vunpack.c.l.b16 %v1406
    %v1478 = vunpack.c.l.b16 %v1407
    %v1479 = vunpack.c.l.b16 %v1408
    %v1480 = vunpack.c.l.b16 %v1409
    %v1481 = vunpack.c.l.b16 %v1410
    %v1482 = vunpack.c.l.b16 %v1411
    %v1483 = vunpack.c.l.b16 %v1412
    %v1484 = vunpack.c.l.b16 %v1413
    %v1485 = vunpack.c.l.b16 %v1414
    %v1486 = vunpack.c.l.b16 %v1415
    %v1487 = vunpack.c.l.b16 %v1416
    %v1488 = vunpack.c.l.b16 %v1417
    %v1489 = vunpack.c.l.b16 %v1418
    %v1490 = vunpack.c.l.b16 %v1419
    %v1491 = vunpack.c.l.b16 %v1420
    %v1492 = vunpack.c.l.b16 %v1421
    %v1493 = vunpack.c.l.b16 %v1422
    %v1494 = vunpack.c.l.b16 %v1423
    %v1495 = vunpack.c.l.b16 %v1424
    %v1496 = vunpack.c.l.b16 %v1425
    %v1497 = vunpack.c.l.b16 %v1426
    %v1498 = vunpack.c.l.b16 %v1427
    %v1499 = vunpack.c.l.b16 %v1428
    %v1500 = vunpack.c.l.b16 %v1429
    %v1501 = vunpack.c.l.b16 %v1430
    %v1502 = vunpack.c.l.b16 %v1431
    %v1503 = vunpack.c.l.b16 %v1432
    %v1504 = vunpack.c.l.b16 %v1433
    %v1505 = vunpack.c.l.b16 %v1434
    %v1506 = vunpack.c.l.b16 %v1435
    %v1507 = vpack.c.b16 %v1476, %v1475
    %v1508 = vpack.c.b16 %v1478, %v1477
    %v1509 = vpack.c.b16 %v1480, %v1479
    %v1510 = vpack.c.b16 %v1482, %v1481
    %v1511 = vpack.c.b16 %v1484, %v1483
    %v1512 = vpack.c.b16 %v1486, %v1485
    %v1513 = vpack.c.b16 %v1488, %v1487
    %v1514 = vpack.c.b16 %v1490, %v1489
    %v1515 = vpack.c.b16 %v1492, %v1491
    %v1516 = vpack.c.b16 %v1494, %v1493
    %v1517 = vpack.c.b16 %v1496, %v1495
    %v1518 = vpack.c.b16 %v1498, %v1497
    %v1519 = vpack.c.b16 %v1500, %v1499
    %v1520 = vpack.c.b16 %v1502, %v1501
    %v1521 = vpack.c.b16 %v1504, %v1503
    %v1522 = vpack.c.b16 %v1506, %v1505
    %1539 = vmatprep.subr.bf16.mxu0 0
    %1540 = vmatpush1.bf16.msra.mxu0 %v1507
    %1541 = vmatprep.subr.bf16.mxu0 0
    %1542 = vmatpush1.bf16.msra.mxu0 %v1508
    %1543 = vmatprep.subr.bf16.mxu0 0
    %1544 = vmatpush1.bf16.msra.mxu0 %v1509
    %1545 = vmatprep.subr.bf16.mxu0 0
    %1546 = vmatpush1.bf16.msra.mxu0 %v1510
    %1547 = vmatprep.subr.bf16.mxu0 0
    %1548 = vmatpush1.bf16.msra.mxu0 %v1511
    %1549 = vmatprep.subr.bf16.mxu0 0
    %1550 = vmatpush1.bf16.msra.mxu0 %v1512
    %1551 = vmatprep.subr.bf16.mxu0 0
    %1552 = vmatpush1.bf16.msra.mxu0 %v1513
    %1553 = vmatprep.subr.bf16.mxu0 0
    %1554 = vmatpush1.bf16.msra.mxu0 %v1514
    %1555 = vmatprep.subr.bf16.mxu0 0
    %1556 = vmatpush1.bf16.msra.mxu0 %v1515
    %1557 = vmatprep.subr.bf16.mxu0 0
    %1558 = vmatpush1.bf16.msra.mxu0 %v1516
    %1559 = vmatprep.subr.bf16.mxu0 0
    %1560 = vmatpush1.bf16.msra.mxu0 %v1517
    %1561 = vmatprep.subr.bf16.mxu0 0
    %1562 = vmatpush1.bf16.msra.mxu0 %v1518
    %1563 = vmatprep.subr.bf16.mxu0 0
    %1564 = vmatpush1.bf16.msra.mxu0 %v1519
    %1565 = vmatprep.subr.bf16.mxu0 0
    %1566 = vmatpush1.bf16.msra.mxu0 %v1520
    %1567 = vmatprep.subr.bf16.mxu0 0
    %1568 = vmatpush1.bf16.msra.mxu0 %v1521
    %1569 = vmatprep.subr.bf16.mxu0 0
    %1570 = vmatpush1.bf16.msra.mxu0 %v1522
    %1571 = vmatprep.mubr.bf16.mxu0 %v1403
    %1572 = vmatmul.mubr.bf16.gmra.mrb[0].mxu0 %v1402
    %v1573 = vpop.f32.mrb[0].mxu0
    %v1574 = vadd.f32 %v1441, %v1573
    %v1575 = vpop.f32.mrb[0].mxu0
    %v1576 = vpop.f32.mrb[0].mxu0
    %v1577 = vpop.f32.mrb[0].mxu0
    %1578 = vdwg.mxu0
    %v1579 = vmax.f32 %v1574, 0.0
    %1580 = vst [vmem:[#allocation2] sm:$0x3] %v1579
    // Predicated region
    $region38: #{fcn_forward.1} parent=1 // pred_check
      _
    $region39: #{fcn_forward.1} parent=1 // pred_check_branch
      %1582 = sbr.rel (0) target = $region41
    $region40: #{fcn_forward.1} parent=1 // pred_region
      %s1584 = ssub.s32 32, 32
      %1585 = vsyncadd [#allocation3], %s1584
      %s1587 = sshll.u32 [#allocation2], 4
      %s1588 = int_to_ptr.vmem [resolvable:$true] %s1587
      %1590 = dma.vmem_to_hbm [thread:$0]  %s1588, 32, %s9, [#allocation3]
    $region41: #{fcn_forward.1} parent=1 // pred_fallthru
      _
    // Predicated region
    $region42: #{fcn_forward.1} parent=1 // pred_check
      _
    $region43: #{fcn_forward.1} parent=1 // pred_check_branch
      %1592 = sbr.rel (0) target = $region45
    $region44: #{fcn_forward.1} parent=1 // pred_region
      %1593 = dma.done [#allocation3], 32
    $region45: #{fcn_forward.1} parent=1 // pred_fallthru
      _
    %1594 = vsyncpa [#allocation3], 1

</llo_original>
